<compile_context>
chip_gen: v7x
topology: tpu7x:2x2x1
jax: 0.10.0
libtpu: 0.0.40
codegen_flags: <defaults>
</compile_context>

<pallas_src>
import functools
import math

import jax
import jax.numpy as jnp
from jax.experimental import pallas as pl
from jax.experimental.pallas import tpu as pltpu

BN_SCALE = 1.0 / math.sqrt(1.0 + 1e-5)  # eval-mode BatchNorm1d with default stats


def _round_up(x, m):
    return (x + m - 1) // m * m


# ----------------------------------------------------------------------------
# Fused Pallas kernel: numerical linear + all PLE layers + all towers
# ----------------------------------------------------------------------------
def _ple_fused_kernel(*refs, task_num, shared_expert_num, specific_expert_num,
                      bottom_mlp_dims, tower_mlp_dims, bn_scale, out_pad):
    n_expert = task_num * specific_expert_num + shared_expert_num
    layers_num = len(bottom_mlp_dims)

    it = iter(refs[:-1])
    o_ref = refs[-1]

    cat_ref = next(it)          # (bb, embed_output_dim)  categorical slab (zero-padded tail)
    num_x_ref = next(it)        # (bb, numerical_num)
    num_w_ref = next(it)        # (numerical_num, embed_output_dim)  zero-padded wide weight
    num_b_ref = next(it)        # (1, embed_output_dim)

    layer_refs = []
    for _ in range(layers_num):
        we = next(it)           # (Din_i, n_expert * H_i)   packed expert weights
        be = next(it)           # (1,     n_expert * H_i)
        gates = [(next(it), next(it)) for _ in range(task_num + 1)]   # (Din_i,G_j),(1,G_j)
        layer_refs.append((we, be, gates))

    tower_refs = []
    for _ in range(task_num):
        hidden = [(next(it), next(it)) for _ in range(len(tower_mlp_dims))]
        head = (next(it), next(it))
        tower_refs.append((hidden, head))

    # ---- input embedding: numerical Linear fused into the wide slab --------
    emb0 = (cat_ref[...]
            + jnp.dot(num_x_ref[...], num_w_ref[...],
                      preferred_element_type=jnp.float32)
            + num_b_ref[...])                                   # (bb, embed_output_dim)

    # task_expert_index, same construction as the PyTorch module
    tei = []
    for t in range(task_num):
        idxs = list(range(t * specific_expert_num, (t + 1) * specific_expert_num))
        idxs += list(range(task_num * specific_expert_num,
                           task_num * specific_expert_num + shared_expert_num))
        tei.append(idxs)
    tei.append(list(range(n_expert)))

    # duplicate(): every branch starts from the same emb0 (shared branch is the
    # mean of identical copies == emb0), so no copies are materialised.
    task_fea = [emb0] * (task_num + 1)

    for i in range(layers_num):
        H = bottom_mlp_dims[i]
        we_ref, be_ref, gate_refs = layer_refs[i]
        w_all = we_ref[...]
        b_all = be_ref[...]

        if i == 0:
            # layer-0 inputs are identical across branches -> all experts once
            y = jnp.dot(task_fea[0], w_all, preferred_element_type=jnp.float32) + b_all
            y = jnp.maximum(y * bn_scale, 0.0)                  # Linear -> BN(eval) -> ReLU
            y_all = [y] * (task_num + 1)
        else:
            y_all = []
            for j in range(task_num + 1):
                y = jnp.dot(task_fea[j], w_all, preferred_element_type=jnp.float32) + b_all
                y_all.append(jnp.maximum(y * bn_scale, 0.0))

        new_fea = []
        for j in range(task_num + 1):
            wg_ref, bg_ref = gate_refs[j]
            logits = jnp.dot(task_fea[j], wg_ref[...],
                             preferred_element_type=jnp.float32) + bg_ref[...]
            logits = logits - jnp.max(logits, axis=-1, keepdims=True)
            p = jnp.exp(logits)
            gate = p * pl.reciprocal(jnp.sum(p, axis=-1, keepdims=True), approx=True)
            y = y_all[j]
            acc = jnp.zeros((y.shape[0], H), jnp.float32)
            for pos, e in enumerate(tei[j]):                    # bmm(gate, experts)
                acc = acc + gate[:, pos:pos + 1] * y[:, e * H:(e + 1) * H]
            new_fea.append(acc)
        task_fea = new_fea

    # ---- per-task towers: (Linear+BN+ReLU)* -> Linear(.,1) -> sigmoid -------
    rows = task_fea[0].shape[0]
    lane = jax.lax.broadcasted_iota(jnp.int32, (rows, out_pad), 1)
    res = jnp.zeros((rows, out_pad), jnp.float32)
    for t in range(task_num):
        h = task_fea[t]
        hidden, (wo_ref, bo_ref) = tower_refs[t]
        for (w_ref, b_ref) in hidden:
            h = jnp.dot(h, w_ref[...], preferred_element_type=jnp.float32) + b_ref[...]
            h = jnp.maximum(h * bn_scale, 0.0)
        z = jnp.dot(h, wo_ref[...], preferred_element_type=jnp.float32) + bo_ref[...]
        s = jax.nn.sigmoid(z)                                   # (bb, 1), exact
        res = res + jnp.where(lane == t, s, 0.0)                # lane-dense assembly
    o_ref[...] = res


# ----------------------------------------------------------------------------
# Parameter construction (deterministic, synthetic) and one-time packing
# ----------------------------------------------------------------------------
def init_params(key, field_dims, numerical_num, embed_dim, bottom_mlp_dims,
                tower_mlp_dims, task_num, shared_expert_num, specific_expert_num):
    n_expert = specific_expert_num * task_num + shared_expert_num
    keys = iter(jax.random.split(key, 4096))

    def dense(din, dout):
        w = jax.random.normal(next(keys), (din, dout), jnp.float32) * 0.1
        b = jax.random.normal(next(keys), (dout,), jnp.float32) * 0.01
        return w, b

    params = {}
    params["emb_table"] = jax.random.normal(
        next(keys), (sum(field_dims), embed_dim), jnp.float32) * 0.1
    params["num_w"], params["num_b"] = dense(numerical_num, embed_dim)

    embed_output_dim = (len(field_dims) + 1) * embed_dim
    layers_num = len(bottom_mlp_dims)

    experts, gates = [], []
    for i in range(layers_num):
        din = embed_output_dim if i == 0 else bottom_mlp_dims[i - 1]
        dout = bottom_mlp_dims[i]
        experts.append([dense(din, dout) for _ in range(n_expert)])
        layer_gates = [dense(din, shared_expert_num + specific_expert_num)
                       for _ in range(task_num)]
        layer_gates.append(dense(din, shared_expert_num + task_num * specific_expert_num))
        gates.append(layer_gates)
    params["expert"] = experts
    params["gate"] = gates

    towers = []
    for _ in range(task_num):
        din = bottom_mlp_dims[-1]
        hidden = []
        for d in tower_mlp_dims:
            hidden.append(dense(din, d))
            din = d
        towers.append({"hidden": hidden, "out": dense(din, 1)})
    params["tower"] = towers
    return params


def pack_params(params, *, field_dims, embed_dim, task_num):
    """One-time host-side packing into the layout the fused kernel consumes."""
    Dc = len(field_dims) * embed_dim
    num_w, num_b = params["num_w"], params["num_b"]
    numerical_num = num_w.shape[0]

    packed = {
        "emb_table": params["emb_table"],
        # numerical Linear folded into the full embed_output_dim space
        "num_w": jnp.concatenate(
            [jnp.zeros((numerical_num, Dc), jnp.float32), num_w], axis=1),
        "num_b": jnp.concatenate(
            [jnp.zeros((1, Dc), jnp.float32), num_b.reshape(1, -1)], axis=1),
    }

    layers = []
    for i, layer_experts in enumerate(params["expert"]):
        w_all = jnp.concatenate([w for (w, _) in layer_experts], axis=1)   # (Din, E*H)
        b_all = jnp.concatenate([b.reshape(1, -1) for (_, b) in layer_experts], axis=1)
        gates = tuple((wg, bg.reshape(1, -1)) for (wg, bg) in params["gate"][i])
        layers.append((w_all, b_all, gates))
    packed["layers"] = tuple(layers)

    towers = []
    for t in range(task_num):
        hidden = tuple((w, b.reshape(1, -1)) for (w, b) in params["tower"][t]["hidden"])
        wo, bo = params["tower"][t]["out"]
        towers.append((hidden, (wo, bo.reshape(1, -1))))
    packed["towers"] = tuple(towers)
    return packed


# ----------------------------------------------------------------------------
# Forward pass (one pallas_call)
# ----------------------------------------------------------------------------
def ple_forward(packed, categorical_x, numerical_x, *, field_dims, embed_dim,
                bottom_mlp_dims, tower_mlp_dims, task_num, shared_expert_num,
                specific_expert_num):
    B = categorical_x.shape[0]
    F = len(field_dims)
    Dc = F * embed_dim
    D0 = Dc + embed_dim                                   # embed_output_dim

    # Embedding lookup (data-dependent gather stays in plain JAX glue).
    off = [0]
    for d in field_dims[:-1]:
        off.append(off[-1] + d)
    offsets = jnp.asarray(off, jnp.int32)
    cat_emb = packed["emb_table"][categorical_x + offsets[None, :]]      # (B, F, E)
    cat_flat = cat_emb.reshape(B, Dc).astype(jnp.float32)
    # pad the categorical slab to embed_output_dim: emb0 = cat_pad + num @ W_wide + b
    cat_pad = jnp.concatenate([cat_flat, jnp.zeros((B, embed_dim), jnp.float32)], axis=1)
    num_x = numerical_x.astype(jnp.float32)

    # Batch tiling: (8,128)-aligned rows, "parallel" grid axis (megacore / pipelining).
    B8 = _round_up(B, 8)
    bb = B8 if B8 <= 256 else 256
    B_pad = _round_up(B8, bb)
    if B_pad != B:
        pad = B_pad - B
        cat_pad = jnp.concatenate([cat_pad, jnp.zeros((pad, D0), jnp.float32)], axis=0)
        num_x = jnp.concatenate(
            [num_x, jnp.zeros((pad, num_x.shape[1]), jnp.float32)], axis=0)

    inputs, in_specs = [], []

    def add_act(a):   # batch-tiled activation
        inputs.append(a)
        in_specs.append(pl.BlockSpec((bb, a.shape[1]), lambda b: (b, 0)))

    def add_w(a):     # whole weight, resident across all grid steps
        inputs.append(a)
        in_specs.append(pl.BlockSpec(a.shape, lambda b: (0, 0)))

    add_act(cat_pad)
    add_act(num_x)
    add_w(packed["num_w"])
    add_w(packed["num_b"])
    for (w_all, b_all, gates) in packed["layers"]:
        add_w(w_all)
        add_w(b_all)
        for (wg, bg) in gates:
            add_w(wg)
            add_w(bg)
    for (hidden, (wo, bo)) in packed["towers"]:
        for (w, b) in hidden:
            add_w(w)
            add_w(b)
        add_w(wo)
        add_w(bo)

    out_pad = _round_up(max(task_num, 1), 128)            # lane-dense output slab
    kernel = functools.partial(
        _ple_fused_kernel,
        task_num=task_num,
        shared_expert_num=shared_expert_num,
        specific_expert_num=specific_expert_num,
        bottom_mlp_dims=tuple(bottom_mlp_dims),
        tower_mlp_dims=tuple(tower_mlp_dims),
        bn_scale=BN_SCALE,
        out_pad=out_pad)

    out = pl.pallas_call(
        kernel,
        out_shape=jax.ShapeDtypeStruct((B_pad, out_pad), jnp.float32),
        grid=(B_pad // bb,),
        in_specs=in_specs,
        out_specs=pl.BlockSpec((bb, out_pad), lambda b: (b, 0)),
        compiler_params=pltpu.CompilerParams(
            dimension_semantics=("parallel",),
            vmem_limit_bytes=32 * 1024 * 1024),
    )(*inputs)

    return [out[:B, t] for t in range(task_num)]


# ----------------------------------------------------------------------------
# Demo
# ----------------------------------------------------------------------------
if __name__ == "__main__":
    # small, module-consistent config
    field_dims = [10, 20, 30]          # 3 categorical fields
    numerical_num = 5
    embed_dim = 16
    bottom_mlp_dims = [32, 16]
    tower_mlp_dims = [16, 8]
    task_num = 2
    shared_expert_num = 1
    specific_expert_num = 2
    batch = 8

    key = jax.random.PRNGKey(0)
    kp, kc, kn = jax.random.split(key, 3)

    params = init_params(kp, field_dims, numerical_num, embed_dim,
                         bottom_mlp_dims, tower_mlp_dims, task_num,
                         shared_expert_num, specific_expert_num)
    packed = pack_params(params, field_dims=field_dims, embed_dim=embed_dim,
                         task_num=task_num)

    cat_keys = jax.random.split(kc, len(field_dims))
    categorical_x = jnp.stack(
        [jax.random.randint(cat_keys[f], (batch,), 0, field_dims[f], jnp.int32)
         for f in range(len(field_dims))], axis=1)                      # (B, F)
    numerical_x = jax.random.normal(kn, (batch, numerical_num), jnp.float32)

    fwd = jax.jit(functools.partial(
        ple_forward,
        field_dims=tuple(field_dims), embed_dim=embed_dim,
        bottom_mlp_dims=tuple(bottom_mlp_dims), tower_mlp_dims=tuple(tower_mlp_dims),
        task_num=task_num, shared_expert_num=shared_expert_num,
        specific_expert_num=specific_expert_num))

    results = fwd(packed, categorical_x, numerical_x)

    for r in results:
        jax.block_until_ready(r)
        assert r.shape == (batch,)
        assert bool(jnp.all(jnp.isfinite(r)))
        assert bool(jnp.all((r >= 0.0) & (r <= 1.0)))

    print("KERNEL_OK")
</pallas_src>

<mosaic_0001>
module attributes {stable_mosaic.version = 11 : i64} {
  func.func @_ple_fused_kernel(%arg0: i32, %arg1: memref<8x64xf32, #tpu.memory_space<vmem>>, %arg2: memref<8x5xf32, #tpu.memory_space<vmem>>, %arg3: memref<5x64xf32, #tpu.memory_space<vmem>>, %arg4: memref<1x64xf32, #tpu.memory_space<vmem>>, %arg5: memref<64x160xf32, #tpu.memory_space<vmem>>, %arg6: memref<1x160xf32, #tpu.memory_space<vmem>>, %arg7: memref<64x3xf32, #tpu.memory_space<vmem>>, %arg8: memref<1x3xf32, #tpu.memory_space<vmem>>, %arg9: memref<64x3xf32, #tpu.memory_space<vmem>>, %arg10: memref<1x3xf32, #tpu.memory_space<vmem>>, %arg11: memref<64x5xf32, #tpu.memory_space<vmem>>, %arg12: memref<1x5xf32, #tpu.memory_space<vmem>>, %arg13: memref<32x80xf32, #tpu.memory_space<vmem>>, %arg14: memref<1x80xf32, #tpu.memory_space<vmem>>, %arg15: memref<32x3xf32, #tpu.memory_space<vmem>>, %arg16: memref<1x3xf32, #tpu.memory_space<vmem>>, %arg17: memref<32x3xf32, #tpu.memory_space<vmem>>, %arg18: memref<1x3xf32, #tpu.memory_space<vmem>>, %arg19: memref<32x5xf32, #tpu.memory_space<vmem>>, %arg20: memref<1x5xf32, #tpu.memory_space<vmem>>, %arg21: memref<16x16xf32, #tpu.memory_space<vmem>>, %arg22: memref<1x16xf32, #tpu.memory_space<vmem>>, %arg23: memref<16x8xf32, #tpu.memory_space<vmem>>, %arg24: memref<1x8xf32, #tpu.memory_space<vmem>>, %arg25: memref<8x1xf32, #tpu.memory_space<vmem>>, %arg26: memref<1x1xf32, #tpu.memory_space<vmem>>, %arg27: memref<16x16xf32, #tpu.memory_space<vmem>>, %arg28: memref<1x16xf32, #tpu.memory_space<vmem>>, %arg29: memref<16x8xf32, #tpu.memory_space<vmem>>, %arg30: memref<1x8xf32, #tpu.memory_space<vmem>>, %arg31: memref<8x1xf32, #tpu.memory_space<vmem>>, %arg32: memref<1x1xf32, #tpu.memory_space<vmem>>, %arg33: memref<8x128xf32, #tpu.memory_space<vmem>>) attributes {dimension_semantics = [#tpu.dimension_semantics<parallel>], iteration_bounds = array<i64: 1>, scalar_prefetch = 0 : i64, scratch_operands = 0 : i64, tpu.core_type = #tpu.core_type<tc>, window_params = [{transform_indices = @transform_0, window_bounds = array<i64: 8, 64>}, {transform_indices = @transform_1, window_bounds = array<i64: 8, 5>}, {pipeline_mode = #tpu.pipeline_mode<synchronous>, transform_indices = @transform_2, window_bounds = array<i64: 5, 64>}, {pipeline_mode = #tpu.pipeline_mode<synchronous>, transform_indices = @transform_3, window_bounds = array<i64: 1, 64>}, {pipeline_mode = #tpu.pipeline_mode<synchronous>, transform_indices = @transform_4, window_bounds = array<i64: 64, 160>}, {pipeline_mode = #tpu.pipeline_mode<synchronous>, transform_indices = @transform_5, window_bounds = array<i64: 1, 160>}, {pipeline_mode = #tpu.pipeline_mode<synchronous>, transform_indices = @transform_6, window_bounds = array<i64: 64, 3>}, {pipeline_mode = #tpu.pipeline_mode<synchronous>, transform_indices = @transform_7, window_bounds = array<i64: 1, 3>}, {pipeline_mode = #tpu.pipeline_mode<synchronous>, transform_indices = @transform_8, window_bounds = array<i64: 64, 3>}, {pipeline_mode = #tpu.pipeline_mode<synchronous>, transform_indices = @transform_9, window_bounds = array<i64: 1, 3>}, {pipeline_mode = #tpu.pipeline_mode<synchronous>, transform_indices = @transform_10, window_bounds = array<i64: 64, 5>}, {pipeline_mode = #tpu.pipeline_mode<synchronous>, transform_indices = @transform_11, window_bounds = array<i64: 1, 5>}, {pipeline_mode = #tpu.pipeline_mode<synchronous>, transform_indices = @transform_12, window_bounds = array<i64: 32, 80>}, {pipeline_mode = #tpu.pipeline_mode<synchronous>, transform_indices = @transform_13, window_bounds = array<i64: 1, 80>}, {pipeline_mode = #tpu.pipeline_mode<synchronous>, transform_indices = @transform_14, window_bounds = array<i64: 32, 3>}, {pipeline_mode = #tpu.pipeline_mode<synchronous>, transform_indices = @transform_15, window_bounds = array<i64: 1, 3>}, {pipeline_mode = #tpu.pipeline_mode<synchronous>, transform_indices = @transform_16, window_bounds = array<i64: 32, 3>}, {pipeline_mode = #tpu.pipeline_mode<synchronous>, transform_indices = @transform_17, window_bounds = array<i64: 1, 3>}, {pipeline_mode = #tpu.pipeline_mode<synchronous>, transform_indices = @transform_18, window_bounds = array<i64: 32, 5>}, {pipeline_mode = #tpu.pipeline_mode<synchronous>, transform_indices = @transform_19, window_bounds = array<i64: 1, 5>}, {pipeline_mode = #tpu.pipeline_mode<synchronous>, transform_indices = @transform_20, window_bounds = array<i64: 16, 16>}, {pipeline_mode = #tpu.pipeline_mode<synchronous>, transform_indices = @transform_21, window_bounds = array<i64: 1, 16>}, {pipeline_mode = #tpu.pipeline_mode<synchronous>, transform_indices = @transform_22, window_bounds = array<i64: 16, 8>}, {pipeline_mode = #tpu.pipeline_mode<synchronous>, transform_indices = @transform_23, window_bounds = array<i64: 1, 8>}, {pipeline_mode = #tpu.pipeline_mode<synchronous>, transform_indices = @transform_24, window_bounds = array<i64: 8, 1>}, {pipeline_mode = #tpu.pipeline_mode<synchronous>, transform_indices = @transform_25, window_bounds = array<i64: 1, 1>}, {pipeline_mode = #tpu.pipeline_mode<synchronous>, transform_indices = @transform_26, window_bounds = array<i64: 16, 16>}, {pipeline_mode = #tpu.pipeline_mode<synchronous>, transform_indices = @transform_27, window_bounds = array<i64: 1, 16>}, {pipeline_mode = #tpu.pipeline_mode<synchronous>, transform_indices = @transform_28, window_bounds = array<i64: 16, 8>}, {pipeline_mode = #tpu.pipeline_mode<synchronous>, transform_indices = @transform_29, window_bounds = array<i64: 1, 8>}, {pipeline_mode = #tpu.pipeline_mode<synchronous>, transform_indices = @transform_30, window_bounds = array<i64: 8, 1>}, {pipeline_mode = #tpu.pipeline_mode<synchronous>, transform_indices = @transform_31, window_bounds = array<i64: 1, 1>}, {transform_indices = @transform_32, window_bounds = array<i64: 8, 128>}]} {
    %c0 = arith.constant 0 : index
    %c0_0 = arith.constant 0 : index
    %0 = vector.load %arg1[%c0, %c0_0] : memref<8x64xf32, #tpu.memory_space<vmem>>, vector<8x64xf32>
    %c0_1 = arith.constant 0 : index
    %c0_2 = arith.constant 0 : index
    %1 = vector.load %arg2[%c0_1, %c0_2] : memref<8x5xf32, #tpu.memory_space<vmem>>, vector<8x5xf32>
    %c0_3 = arith.constant 0 : index
    %c0_4 = arith.constant 0 : index
    %2 = vector.load %arg3[%c0_3, %c0_4] : memref<5x64xf32, #tpu.memory_space<vmem>>, vector<5x64xf32>
    %cst = arith.constant dense<0.000000e+00> : vector<8x64xf32>
    %3 = tpu.matmul %1, %2, %cst {dimension_numbers = #tpu.dot_dimension_numbers<[1], [0], [0], [1], [0, 0, 1, 1], [], []>} : vector<8x5xf32>, vector<5x64xf32>, vector<8x64xf32> -> vector<8x64xf32>
    %4 = arith.addf %0, %3 : vector<8x64xf32>
    %c0_5 = arith.constant 0 : index
    %c0_6 = arith.constant 0 : index
    %5 = vector.load %arg4[%c0_5, %c0_6] : memref<1x64xf32, #tpu.memory_space<vmem>>, vector<1x64xf32>
    %6 = vector.broadcast %5 : vector<1x64xf32> to vector<8x64xf32>
    %7 = arith.addf %4, %6 : vector<8x64xf32>
    %c0_7 = arith.constant 0 : index
    %c0_8 = arith.constant 0 : index
    %8 = vector.load %arg5[%c0_7, %c0_8] : memref<64x160xf32, #tpu.memory_space<vmem>>, vector<64x160xf32>
    %c0_9 = arith.constant 0 : index
    %c0_10 = arith.constant 0 : index
    %9 = vector.load %arg6[%c0_9, %c0_10] : memref<1x160xf32, #tpu.memory_space<vmem>>, vector<1x160xf32>
    %cst_11 = arith.constant dense<0.000000e+00> : vector<8x160xf32>
    %10 = tpu.matmul %7, %8, %cst_11 {dimension_numbers = #tpu.dot_dimension_numbers<[1], [0], [0], [1], [0, 0, 1, 1], [], []>} : vector<8x64xf32>, vector<64x160xf32>, vector<8x160xf32> -> vector<8x160xf32>
    %11 = vector.broadcast %9 : vector<1x160xf32> to vector<8x160xf32>
    %12 = arith.addf %10, %11 : vector<8x160xf32>
    %cst_12 = arith.constant 0.999994993 : f32
    %13 = vector.broadcast %cst_12 : f32 to vector<8x160xf32>
    %14 = arith.mulf %12, %13 : vector<8x160xf32>
    %cst_13 = arith.constant 0.000000e+00 : f32
    %15 = vector.broadcast %cst_13 : f32 to vector<8x160xf32>
    %16 = arith.maximumf %14, %15 : vector<8x160xf32>
    %c0_14 = arith.constant 0 : index
    %c0_15 = arith.constant 0 : index
    %17 = vector.load %arg7[%c0_14, %c0_15] : memref<64x3xf32, #tpu.memory_space<vmem>>, vector<64x3xf32>
    %cst_16 = arith.constant dense<0.000000e+00> : vector<8x3xf32>
    %18 = tpu.matmul %7, %17, %cst_16 {dimension_numbers = #tpu.dot_dimension_numbers<[1], [0], [0], [1], [0, 0, 1, 1], [], []>} : vector<8x64xf32>, vector<64x3xf32>, vector<8x3xf32> -> vector<8x3xf32>
    %c0_17 = arith.constant 0 : index
    %c0_18 = arith.constant 0 : index
    %19 = vector.load %arg8[%c0_17, %c0_18] : memref<1x3xf32, #tpu.memory_space<vmem>>, vector<1x3xf32>
    %20 = vector.broadcast %19 : vector<1x3xf32> to vector<8x3xf32>
    %21 = arith.addf %18, %20 : vector<8x3xf32>
    %cst_19 = arith.constant dense<0xFF800000> : vector<8xf32>
    %22 = vector.multi_reduction <maximumf>, %21, %cst_19 [1] : vector<8x3xf32> to vector<8xf32>
    %23 = vector.shape_cast %22 : vector<8xf32> to vector<8x1xf32>
    %24 = vector.broadcast %23 : vector<8x1xf32> to vector<8x3xf32>
    %25 = arith.subf %21, %24 : vector<8x3xf32>
    %26 = math.exp %25 : vector<8x3xf32>
    %cst_20 = arith.constant dense<0.000000e+00> : vector<8xf32>
    %27 = vector.multi_reduction <add>, %26, %cst_20 [1] : vector<8x3xf32> to vector<8xf32>
    %28 = vector.shape_cast %27 : vector<8xf32> to vector<8x1xf32>
    %29 = tpu.reciprocal %28 {approx = true} : vector<8x1xf32> -> vector<8x1xf32>
    %30 = vector.broadcast %29 : vector<8x1xf32> to vector<8x3xf32>
    %31 = arith.mulf %26, %30 : vector<8x3xf32>
    %cst_21 = arith.constant 0.000000e+00 : f32
    %32 = vector.broadcast %cst_21 : f32 to vector<8x32xf32>
    %33 = vector.extract_strided_slice %31 {offsets = [0, 0], sizes = [8, 1], strides = [1, 1]} : vector<8x3xf32> to vector<8x1xf32>
    %34 = vector.extract_strided_slice %16 {offsets = [0, 0], sizes = [8, 32], strides = [1, 1]} : vector<8x160xf32> to vector<8x32xf32>
    %35 = vector.broadcast %33 : vector<8x1xf32> to vector<8x32xf32>
    %36 = arith.mulf %35, %34 : vector<8x32xf32>
    %37 = arith.addf %32, %36 : vector<8x32xf32>
    %38 = vector.extract_strided_slice %31 {offsets = [0, 1], sizes = [8, 1], strides = [1, 1]} : vector<8x3xf32> to vector<8x1xf32>
    %39 = vector.extract_strided_slice %16 {offsets = [0, 32], sizes = [8, 32], strides = [1, 1]} : vector<8x160xf32> to vector<8x32xf32>
    %40 = vector.broadcast %38 : vector<8x1xf32> to vector<8x32xf32>
    %41 = arith.mulf %40, %39 : vector<8x32xf32>
    %42 = arith.addf %37, %41 : vector<8x32xf32>
    %43 = vector.extract_strided_slice %31 {offsets = [0, 2], sizes = [8, 1], strides = [1, 1]} : vector<8x3xf32> to vector<8x1xf32>
    %44 = vector.extract_strided_slice %16 {offsets = [0, 128], sizes = [8, 32], strides = [1, 1]} : vector<8x160xf32> to vector<8x32xf32>
    %45 = vector.broadcast %43 : vector<8x1xf32> to vector<8x32xf32>
    %46 = arith.mulf %45, %44 : vector<8x32xf32>
    %47 = arith.addf %42, %46 : vector<8x32xf32>
    %c0_22 = arith.constant 0 : index
    %c0_23 = arith.constant 0 : index
    %48 = vector.load %arg9[%c0_22, %c0_23] : memref<64x3xf32, #tpu.memory_space<vmem>>, vector<64x3xf32>
    %cst_24 = arith.constant dense<0.000000e+00> : vector<8x3xf32>
    %49 = tpu.matmul %7, %48, %cst_24 {dimension_numbers = #tpu.dot_dimension_numbers<[1], [0], [0], [1], [0, 0, 1, 1], [], []>} : vector<8x64xf32>, vector<64x3xf32>, vector<8x3xf32> -> vector<8x3xf32>
    %c0_25 = arith.constant 0 : index
    %c0_26 = arith.constant 0 : index
    %50 = vector.load %arg10[%c0_25, %c0_26] : memref<1x3xf32, #tpu.memory_space<vmem>>, vector<1x3xf32>
    %51 = vector.broadcast %50 : vector<1x3xf32> to vector<8x3xf32>
    %52 = arith.addf %49, %51 : vector<8x3xf32>
    %cst_27 = arith.constant dense<0xFF800000> : vector<8xf32>
    %53 = vector.multi_reduction <maximumf>, %52, %cst_27 [1] : vector<8x3xf32> to vector<8xf32>
    %54 = vector.shape_cast %53 : vector<8xf32> to vector<8x1xf32>
    %55 = vector.broadcast %54 : vector<8x1xf32> to vector<8x3xf32>
    %56 = arith.subf %52, %55 : vector<8x3xf32>
    %57 = math.exp %56 : vector<8x3xf32>
    %cst_28 = arith.constant dense<0.000000e+00> : vector<8xf32>
    %58 = vector.multi_reduction <add>, %57, %cst_28 [1] : vector<8x3xf32> to vector<8xf32>
    %59 = vector.shape_cast %58 : vector<8xf32> to vector<8x1xf32>
    %60 = tpu.reciprocal %59 {approx = true} : vector<8x1xf32> -> vector<8x1xf32>
    %61 = vector.broadcast %60 : vector<8x1xf32> to vector<8x3xf32>
    %62 = arith.mulf %57, %61 : vector<8x3xf32>
    %cst_29 = arith.constant 0.000000e+00 : f32
    %63 = vector.broadcast %cst_29 : f32 to vector<8x32xf32>
    %64 = vector.extract_strided_slice %62 {offsets = [0, 0], sizes = [8, 1], strides = [1, 1]} : vector<8x3xf32> to vector<8x1xf32>
    %65 = vector.extract_strided_slice %16 {offsets = [0, 64], sizes = [8, 32], strides = [1, 1]} : vector<8x160xf32> to vector<8x32xf32>
    %66 = vector.broadcast %64 : vector<8x1xf32> to vector<8x32xf32>
    %67 = arith.mulf %66, %65 : vector<8x32xf32>
    %68 = arith.addf %63, %67 : vector<8x32xf32>
    %69 = vector.extract_strided_slice %62 {offsets = [0, 1], sizes = [8, 1], strides = [1, 1]} : vector<8x3xf32> to vector<8x1xf32>
    %70 = vector.extract_strided_slice %16 {offsets = [0, 96], sizes = [8, 32], strides = [1, 1]} : vector<8x160xf32> to vector<8x32xf32>
    %71 = vector.broadcast %69 : vector<8x1xf32> to vector<8x32xf32>
    %72 = arith.mulf %71, %70 : vector<8x32xf32>
    %73 = arith.addf %68, %72 : vector<8x32xf32>
    %74 = vector.extract_strided_slice %62 {offsets = [0, 2], sizes = [8, 1], strides = [1, 1]} : vector<8x3xf32> to vector<8x1xf32>
    %75 = vector.extract_strided_slice %16 {offsets = [0, 128], sizes = [8, 32], strides = [1, 1]} : vector<8x160xf32> to vector<8x32xf32>
    %76 = vector.broadcast %74 : vector<8x1xf32> to vector<8x32xf32>
    %77 = arith.mulf %76, %75 : vector<8x32xf32>
    %78 = arith.addf %73, %77 : vector<8x32xf32>
    %c0_30 = arith.constant 0 : index
    %c0_31 = arith.constant 0 : index
    %79 = vector.load %arg13[%c0_30, %c0_31] : memref<32x80xf32, #tpu.memory_space<vmem>>, vector<32x80xf32>
    %c0_32 = arith.constant 0 : index
    %c0_33 = arith.constant 0 : index
    %80 = vector.load %arg14[%c0_32, %c0_33] : memref<1x80xf32, #tpu.memory_space<vmem>>, vector<1x80xf32>
    %cst_34 = arith.constant dense<0.000000e+00> : vector<8x80xf32>
    %81 = tpu.matmul %47, %79, %cst_34 {dimension_numbers = #tpu.dot_dimension_numbers<[1], [0], [0], [1], [0, 0, 1, 1], [], []>} : vector<8x32xf32>, vector<32x80xf32>, vector<8x80xf32> -> vector<8x80xf32>
    %82 = vector.broadcast %80 : vector<1x80xf32> to vector<8x80xf32>
    %83 = arith.addf %81, %82 : vector<8x80xf32>
    %cst_35 = arith.constant 0.999994993 : f32
    %84 = vector.broadcast %cst_35 : f32 to vector<8x80xf32>
    %85 = arith.mulf %83, %84 : vector<8x80xf32>
    %cst_36 = arith.constant 0.000000e+00 : f32
    %86 = vector.broadcast %cst_36 : f32 to vector<8x80xf32>
    %87 = arith.maximumf %85, %86 : vector<8x80xf32>
    %cst_37 = arith.constant dense<0.000000e+00> : vector<8x80xf32>
    %88 = tpu.matmul %78, %79, %cst_37 {dimension_numbers = #tpu.dot_dimension_numbers<[1], [0], [0], [1], [0, 0, 1, 1], [], []>} : vector<8x32xf32>, vector<32x80xf32>, vector<8x80xf32> -> vector<8x80xf32>
    %89 = vector.broadcast %80 : vector<1x80xf32> to vector<8x80xf32>
    %90 = arith.addf %88, %89 : vector<8x80xf32>
    %cst_38 = arith.constant 0.999994993 : f32
    %91 = vector.broadcast %cst_38 : f32 to vector<8x80xf32>
    %92 = arith.mulf %90, %91 : vector<8x80xf32>
    %cst_39 = arith.constant 0.000000e+00 : f32
    %93 = vector.broadcast %cst_39 : f32 to vector<8x80xf32>
    %94 = arith.maximumf %92, %93 : vector<8x80xf32>
    %c0_40 = arith.constant 0 : index
    %c0_41 = arith.constant 0 : index
    %95 = vector.load %arg15[%c0_40, %c0_41] : memref<32x3xf32, #tpu.memory_space<vmem>>, vector<32x3xf32>
    %cst_42 = arith.constant dense<0.000000e+00> : vector<8x3xf32>
    %96 = tpu.matmul %47, %95, %cst_42 {dimension_numbers = #tpu.dot_dimension_numbers<[1], [0], [0], [1], [0, 0, 1, 1], [], []>} : vector<8x32xf32>, vector<32x3xf32>, vector<8x3xf32> -> vector<8x3xf32>
    %c0_43 = arith.constant 0 : index
    %c0_44 = arith.constant 0 : index
    %97 = vector.load %arg16[%c0_43, %c0_44] : memref<1x3xf32, #tpu.memory_space<vmem>>, vector<1x3xf32>
    %98 = vector.broadcast %97 : vector<1x3xf32> to vector<8x3xf32>
    %99 = arith.addf %96, %98 : vector<8x3xf32>
    %cst_45 = arith.constant dense<0xFF800000> : vector<8xf32>
    %100 = vector.multi_reduction <maximumf>, %99, %cst_45 [1] : vector<8x3xf32> to vector<8xf32>
    %101 = vector.shape_cast %100 : vector<8xf32> to vector<8x1xf32>
    %102 = vector.broadcast %101 : vector<8x1xf32> to vector<8x3xf32>
    %103 = arith.subf %99, %102 : vector<8x3xf32>
    %104 = math.exp %103 : vector<8x3xf32>
    %cst_46 = arith.constant dense<0.000000e+00> : vector<8xf32>
    %105 = vector.multi_reduction <add>, %104, %cst_46 [1] : vector<8x3xf32> to vector<8xf32>
    %106 = vector.shape_cast %105 : vector<8xf32> to vector<8x1xf32>
    %107 = tpu.reciprocal %106 {approx = true} : vector<8x1xf32> -> vector<8x1xf32>
    %108 = vector.broadcast %107 : vector<8x1xf32> to vector<8x3xf32>
    %109 = arith.mulf %104, %108 : vector<8x3xf32>
    %cst_47 = arith.constant 0.000000e+00 : f32
    %110 = vector.broadcast %cst_47 : f32 to vector<8x16xf32>
    %111 = vector.extract_strided_slice %109 {offsets = [0, 0], sizes = [8, 1], strides = [1, 1]} : vector<8x3xf32> to vector<8x1xf32>
    %112 = vector.extract_strided_slice %87 {offsets = [0, 0], sizes = [8, 16], strides = [1, 1]} : vector<8x80xf32> to vector<8x16xf32>
    %113 = vector.broadcast %111 : vector<8x1xf32> to vector<8x16xf32>
    %114 = arith.mulf %113, %112 : vector<8x16xf32>
    %115 = arith.addf %110, %114 : vector<8x16xf32>
    %116 = vector.extract_strided_slice %109 {offsets = [0, 1], sizes = [8, 1], strides = [1, 1]} : vector<8x3xf32> to vector<8x1xf32>
    %117 = vector.extract_strided_slice %87 {offsets = [0, 16], sizes = [8, 16], strides = [1, 1]} : vector<8x80xf32> to vector<8x16xf32>
    %118 = vector.broadcast %116 : vector<8x1xf32> to vector<8x16xf32>
    %119 = arith.mulf %118, %117 : vector<8x16xf32>
    %120 = arith.addf %115, %119 : vector<8x16xf32>
    %121 = vector.extract_strided_slice %109 {offsets = [0, 2], sizes = [8, 1], strides = [1, 1]} : vector<8x3xf32> to vector<8x1xf32>
    %122 = vector.extract_strided_slice %87 {offsets = [0, 64], sizes = [8, 16], strides = [1, 1]} : vector<8x80xf32> to vector<8x16xf32>
    %123 = vector.broadcast %121 : vector<8x1xf32> to vector<8x16xf32>
    %124 = arith.mulf %123, %122 : vector<8x16xf32>
    %125 = arith.addf %120, %124 : vector<8x16xf32>
    %c0_48 = arith.constant 0 : index
    %c0_49 = arith.constant 0 : index
    %126 = vector.load %arg17[%c0_48, %c0_49] : memref<32x3xf32, #tpu.memory_space<vmem>>, vector<32x3xf32>
    %cst_50 = arith.constant dense<0.000000e+00> : vector<8x3xf32>
    %127 = tpu.matmul %78, %126, %cst_50 {dimension_numbers = #tpu.dot_dimension_numbers<[1], [0], [0], [1], [0, 0, 1, 1], [], []>} : vector<8x32xf32>, vector<32x3xf32>, vector<8x3xf32> -> vector<8x3xf32>
    %c0_51 = arith.constant 0 : index
    %c0_52 = arith.constant 0 : index
    %128 = vector.load %arg18[%c0_51, %c0_52] : memref<1x3xf32, #tpu.memory_space<vmem>>, vector<1x3xf32>
    %129 = vector.broadcast %128 : vector<1x3xf32> to vector<8x3xf32>
    %130 = arith.addf %127, %129 : vector<8x3xf32>
    %cst_53 = arith.constant dense<0xFF800000> : vector<8xf32>
    %131 = vector.multi_reduction <maximumf>, %130, %cst_53 [1] : vector<8x3xf32> to vector<8xf32>
    %132 = vector.shape_cast %131 : vector<8xf32> to vector<8x1xf32>
    %133 = vector.broadcast %132 : vector<8x1xf32> to vector<8x3xf32>
    %134 = arith.subf %130, %133 : vector<8x3xf32>
    %135 = math.exp %134 : vector<8x3xf32>
    %cst_54 = arith.constant dense<0.000000e+00> : vector<8xf32>
    %136 = vector.multi_reduction <add>, %135, %cst_54 [1] : vector<8x3xf32> to vector<8xf32>
    %137 = vector.shape_cast %136 : vector<8xf32> to vector<8x1xf32>
    %138 = tpu.reciprocal %137 {approx = true} : vector<8x1xf32> -> vector<8x1xf32>
    %139 = vector.broadcast %138 : vector<8x1xf32> to vector<8x3xf32>
    %140 = arith.mulf %135, %139 : vector<8x3xf32>
    %cst_55 = arith.constant 0.000000e+00 : f32
    %141 = vector.broadcast %cst_55 : f32 to vector<8x16xf32>
    %142 = vector.extract_strided_slice %140 {offsets = [0, 0], sizes = [8, 1], strides = [1, 1]} : vector<8x3xf32> to vector<8x1xf32>
    %143 = vector.extract_strided_slice %94 {offsets = [0, 32], sizes = [8, 16], strides = [1, 1]} : vector<8x80xf32> to vector<8x16xf32>
    %144 = vector.broadcast %142 : vector<8x1xf32> to vector<8x16xf32>
    %145 = arith.mulf %144, %143 : vector<8x16xf32>
    %146 = arith.addf %141, %145 : vector<8x16xf32>
    %147 = vector.extract_strided_slice %140 {offsets = [0, 1], sizes = [8, 1], strides = [1, 1]} : vector<8x3xf32> to vector<8x1xf32>
    %148 = vector.extract_strided_slice %94 {offsets = [0, 48], sizes = [8, 16], strides = [1, 1]} : vector<8x80xf32> to vector<8x16xf32>
    %149 = vector.broadcast %147 : vector<8x1xf32> to vector<8x16xf32>
    %150 = arith.mulf %149, %148 : vector<8x16xf32>
    %151 = arith.addf %146, %150 : vector<8x16xf32>
    %152 = vector.extract_strided_slice %140 {offsets = [0, 2], sizes = [8, 1], strides = [1, 1]} : vector<8x3xf32> to vector<8x1xf32>
    %153 = vector.extract_strided_slice %94 {offsets = [0, 64], sizes = [8, 16], strides = [1, 1]} : vector<8x80xf32> to vector<8x16xf32>
    %154 = vector.broadcast %152 : vector<8x1xf32> to vector<8x16xf32>
    %155 = arith.mulf %154, %153 : vector<8x16xf32>
    %156 = arith.addf %151, %155 : vector<8x16xf32>
    %157 = tpu.iota {dimensions = array<i32: 1>} : vector<8x128xi32>
    %cst_56 = arith.constant 0.000000e+00 : f32
    %158 = vector.broadcast %cst_56 : f32 to vector<8x128xf32>
    %c0_57 = arith.constant 0 : index
    %c0_58 = arith.constant 0 : index
    %159 = vector.load %arg21[%c0_57, %c0_58] : memref<16x16xf32, #tpu.memory_space<vmem>>, vector<16x16xf32>
    %cst_59 = arith.constant dense<0.000000e+00> : vector<8x16xf32>
    %160 = tpu.matmul %125, %159, %cst_59 {dimension_numbers = #tpu.dot_dimension_numbers<[1], [0], [0], [1], [0, 0, 1, 1], [], []>} : vector<8x16xf32>, vector<16x16xf32>, vector<8x16xf32> -> vector<8x16xf32>
    %c0_60 = arith.constant 0 : index
    %c0_61 = arith.constant 0 : index
    %161 = vector.load %arg22[%c0_60, %c0_61] : memref<1x16xf32, #tpu.memory_space<vmem>>, vector<1x16xf32>
    %162 = vector.broadcast %161 : vector<1x16xf32> to vector<8x16xf32>
    %163 = arith.addf %160, %162 : vector<8x16xf32>
    %cst_62 = arith.constant 0.999994993 : f32
    %164 = vector.broadcast %cst_62 : f32 to vector<8x16xf32>
    %165 = arith.mulf %163, %164 : vector<8x16xf32>
    %cst_63 = arith.constant 0.000000e+00 : f32
    %166 = vector.broadcast %cst_63 : f32 to vector<8x16xf32>
    %167 = arith.maximumf %165, %166 : vector<8x16xf32>
    %c0_64 = arith.constant 0 : index
    %c0_65 = arith.constant 0 : index
    %168 = vector.load %arg23[%c0_64, %c0_65] : memref<16x8xf32, #tpu.memory_space<vmem>>, vector<16x8xf32>
    %cst_66 = arith.constant dense<0.000000e+00> : vector<8x8xf32>
    %169 = tpu.matmul %167, %168, %cst_66 {dimension_numbers = #tpu.dot_dimension_numbers<[1], [0], [0], [1], [0, 0, 1, 1], [], []>} : vector<8x16xf32>, vector<16x8xf32>, vector<8x8xf32> -> vector<8x8xf32>
    %c0_67 = arith.constant 0 : index
    %c0_68 = arith.constant 0 : index
    %170 = vector.load %arg24[%c0_67, %c0_68] : memref<1x8xf32, #tpu.memory_space<vmem>>, vector<1x8xf32>
    %171 = vector.broadcast %170 : vector<1x8xf32> to vector<8x8xf32>
    %172 = arith.addf %169, %171 : vector<8x8xf32>
    %cst_69 = arith.constant 0.999994993 : f32
    %173 = vector.broadcast %cst_69 : f32 to vector<8x8xf32>
    %174 = arith.mulf %172, %173 : vector<8x8xf32>
    %cst_70 = arith.constant 0.000000e+00 : f32
    %175 = vector.broadcast %cst_70 : f32 to vector<8x8xf32>
    %176 = arith.maximumf %174, %175 : vector<8x8xf32>
    %c0_71 = arith.constant 0 : index
    %c0_72 = arith.constant 0 : index
    %177 = vector.load %arg25[%c0_71, %c0_72] : memref<8x1xf32, #tpu.memory_space<vmem>>, vector<8x1xf32>
    %cst_73 = arith.constant dense<0.000000e+00> : vector<8x1xf32>
    %178 = tpu.matmul %176, %177, %cst_73 {dimension_numbers = #tpu.dot_dimension_numbers<[1], [0], [0], [1], [0, 0, 1, 1], [], []>} : vector<8x8xf32>, vector<8x1xf32>, vector<8x1xf32> -> vector<8x1xf32>
    %c0_74 = arith.constant 0 : index
    %c0_75 = arith.constant 0 : index
    %179 = vector.load %arg26[%c0_74, %c0_75] : memref<1x1xf32, #tpu.memory_space<vmem>>, vector<1x1xf32>
    %180 = vector.broadcast %179 : vector<1x1xf32> to vector<8x1xf32>
    %181 = arith.addf %178, %180 : vector<8x1xf32>
    %182 = arith.negf %181 : vector<8x1xf32>
    %183 = math.exp %182 : vector<8x1xf32>
    %cst_76 = arith.constant 1.000000e+00 : f32
    %184 = vector.broadcast %cst_76 : f32 to vector<8x1xf32>
    %185 = arith.addf %184, %183 : vector<8x1xf32>
    %186 = arith.divf %184, %185 : vector<8x1xf32>
    %c0_i32 = arith.constant 0 : i32
    %187 = vector.broadcast %c0_i32 : i32 to vector<8x128xi32>
    %188 = arith.cmpi eq, %157, %187 : vector<8x128xi32>
    %cst_77 = arith.constant 0.000000e+00 : f32
    %189 = vector.shape_cast %186 : vector<8x1xf32> to vector<8x1xf32>
    %190 = vector.broadcast %189 : vector<8x1xf32> to vector<8x128xf32>
    %191 = vector.broadcast %cst_77 : f32 to vector<8x128xf32>
    %192 = arith.select %188, %190, %191 : vector<8x128xi1>, vector<8x128xf32>
    %193 = arith.addf %158, %192 : vector<8x128xf32>
    %c0_78 = arith.constant 0 : index
    %c0_79 = arith.constant 0 : index
    %194 = vector.load %arg27[%c0_78, %c0_79] : memref<16x16xf32, #tpu.memory_space<vmem>>, vector<16x16xf32>
    %cst_80 = arith.constant dense<0.000000e+00> : vector<8x16xf32>
    %195 = tpu.matmul %156, %194, %cst_80 {dimension_numbers = #tpu.dot_dimension_numbers<[1], [0], [0], [1], [0, 0, 1, 1], [], []>} : vector<8x16xf32>, vector<16x16xf32>, vector<8x16xf32> -> vector<8x16xf32>
    %c0_81 = arith.constant 0 : index
    %c0_82 = arith.constant 0 : index
    %196 = vector.load %arg28[%c0_81, %c0_82] : memref<1x16xf32, #tpu.memory_space<vmem>>, vector<1x16xf32>
    %197 = vector.broadcast %196 : vector<1x16xf32> to vector<8x16xf32>
    %198 = arith.addf %195, %197 : vector<8x16xf32>
    %cst_83 = arith.constant 0.999994993 : f32
    %199 = vector.broadcast %cst_83 : f32 to vector<8x16xf32>
    %200 = arith.mulf %198, %199 : vector<8x16xf32>
    %cst_84 = arith.constant 0.000000e+00 : f32
    %201 = vector.broadcast %cst_84 : f32 to vector<8x16xf32>
    %202 = arith.maximumf %200, %201 : vector<8x16xf32>
    %c0_85 = arith.constant 0 : index
    %c0_86 = arith.constant 0 : index
    %203 = vector.load %arg29[%c0_85, %c0_86] : memref<16x8xf32, #tpu.memory_space<vmem>>, vector<16x8xf32>
    %cst_87 = arith.constant dense<0.000000e+00> : vector<8x8xf32>
    %204 = tpu.matmul %202, %203, %cst_87 {dimension_numbers = #tpu.dot_dimension_numbers<[1], [0], [0], [1], [0, 0, 1, 1], [], []>} : vector<8x16xf32>, vector<16x8xf32>, vector<8x8xf32> -> vector<8x8xf32>
    %c0_88 = arith.constant 0 : index
    %c0_89 = arith.constant 0 : index
    %205 = vector.load %arg30[%c0_88, %c0_89] : memref<1x8xf32, #tpu.memory_space<vmem>>, vector<1x8xf32>
    %206 = vector.broadcast %205 : vector<1x8xf32> to vector<8x8xf32>
    %207 = arith.addf %204, %206 : vector<8x8xf32>
    %cst_90 = arith.constant 0.999994993 : f32
    %208 = vector.broadcast %cst_90 : f32 to vector<8x8xf32>
    %209 = arith.mulf %207, %208 : vector<8x8xf32>
    %cst_91 = arith.constant 0.000000e+00 : f32
    %210 = vector.broadcast %cst_91 : f32 to vector<8x8xf32>
    %211 = arith.maximumf %209, %210 : vector<8x8xf32>
    %c0_92 = arith.constant 0 : index
    %c0_93 = arith.constant 0 : index
    %212 = vector.load %arg31[%c0_92, %c0_93] : memref<8x1xf32, #tpu.memory_space<vmem>>, vector<8x1xf32>
    %cst_94 = arith.constant dense<0.000000e+00> : vector<8x1xf32>
    %213 = tpu.matmul %211, %212, %cst_94 {dimension_numbers = #tpu.dot_dimension_numbers<[1], [0], [0], [1], [0, 0, 1, 1], [], []>} : vector<8x8xf32>, vector<8x1xf32>, vector<8x1xf32> -> vector<8x1xf32>
    %c0_95 = arith.constant 0 : index
    %c0_96 = arith.constant 0 : index
    %214 = vector.load %arg32[%c0_95, %c0_96] : memref<1x1xf32, #tpu.memory_space<vmem>>, vector<1x1xf32>
    %215 = vector.broadcast %214 : vector<1x1xf32> to vector<8x1xf32>
    %216 = arith.addf %213, %215 : vector<8x1xf32>
    %217 = arith.negf %216 : vector<8x1xf32>
    %218 = math.exp %217 : vector<8x1xf32>
    %cst_97 = arith.constant 1.000000e+00 : f32
    %219 = vector.broadcast %cst_97 : f32 to vector<8x1xf32>
    %220 = arith.addf %219, %218 : vector<8x1xf32>
    %221 = arith.divf %219, %220 : vector<8x1xf32>
    %c1_i32 = arith.constant 1 : i32
    %222 = vector.broadcast %c1_i32 : i32 to vector<8x128xi32>
    %223 = arith.cmpi eq, %157, %222 : vector<8x128xi32>
    %cst_98 = arith.constant 0.000000e+00 : f32
    %224 = vector.shape_cast %221 : vector<8x1xf32> to vector<8x1xf32>
    %225 = vector.broadcast %224 : vector<8x1xf32> to vector<8x128xf32>
    %226 = vector.broadcast %cst_98 : f32 to vector<8x128xf32>
    %227 = arith.select %223, %225, %226 : vector<8x128xi1>, vector<8x128xf32>
    %228 = arith.addf %193, %227 : vector<8x128xf32>
    %c0_99 = arith.constant 0 : index
    %c0_100 = arith.constant 0 : index
    %229 = vector.load %arg33[%c0_99, %c0_100] : memref<8x128xf32, #tpu.memory_space<vmem>>, vector<8x128xf32>
    tpu.vector_store %arg33[%c0_99, %c0_100], %228 {strides = array<i32>} : memref<8x128xf32, #tpu.memory_space<vmem>>, vector<8x128xf32>,
    return
  }
  func.func @transform_0(%arg0: i32) -> (i32, i32) {
    %c0_i32 = arith.constant 0 : i32
    %c0_i32_0 = arith.constant 0 : i32
    return %arg0, %c0_i32 : i32, i32
  }
  func.func @transform_1(%arg0: i32) -> (i32, i32) {
    %c0_i32 = arith.constant 0 : i32
    %c0_i32_0 = arith.constant 0 : i32
    return %arg0, %c0_i32 : i32, i32
  }
  func.func @transform_2(%arg0: i32) -> (i32, i32) {
    %c0_i32 = arith.constant 0 : i32
    %c0_i32_0 = arith.constant 0 : i32
    %c0_i32_1 = arith.constant 0 : i32
    return %c0_i32, %c0_i32_0 : i32, i32
  }
  func.func @transform_3(%arg0: i32) -> (i32, i32) {
    %c0_i32 = arith.constant 0 : i32
    %c0_i32_0 = arith.constant 0 : i32
    %c0_i32_1 = arith.constant 0 : i32
    return %c0_i32, %c0_i32_0 : i32, i32
  }
  func.func @transform_4(%arg0: i32) -> (i32, i32) {
    %c0_i32 = arith.constant 0 : i32
    %c0_i32_0 = arith.constant 0 : i32
    %c0_i32_1 = arith.constant 0 : i32
    return %c0_i32, %c0_i32_0 : i32, i32
  }
  func.func @transform_5(%arg0: i32) -> (i32, i32) {
    %c0_i32 = arith.constant 0 : i32
    %c0_i32_0 = arith.constant 0 : i32
    %c0_i32_1 = arith.constant 0 : i32
    return %c0_i32, %c0_i32_0 : i32, i32
  }
  func.func @transform_6(%arg0: i32) -> (i32, i32) {
    %c0_i32 = arith.constant 0 : i32
    %c0_i32_0 = arith.constant 0 : i32
    %c0_i32_1 = arith.constant 0 : i32
    return %c0_i32, %c0_i32_0 : i32, i32
  }
  func.func @transform_7(%arg0: i32) -> (i32, i32) {
    %c0_i32 = arith.constant 0 : i32
    %c0_i32_0 = arith.constant 0 : i32
    %c0_i32_1 = arith.constant 0 : i32
    return %c0_i32, %c0_i32_0 : i32, i32
  }
  func.func @transform_8(%arg0: i32) -> (i32, i32) {
    %c0_i32 = arith.constant 0 : i32
    %c0_i32_0 = arith.constant 0 : i32
    %c0_i32_1 = arith.constant 0 : i32
    return %c0_i32, %c0_i32_0 : i32, i32
  }
  func.func @transform_9(%arg0: i32) -> (i32, i32) {
    %c0_i32 = arith.constant 0 : i32
    %c0_i32_0 = arith.constant 0 : i32
    %c0_i32_1 = arith.constant 0 : i32
    return %c0_i32, %c0_i32_0 : i32, i32
  }
  func.func @transform_10(%arg0: i32) -> (i32, i32) {
    %c0_i32 = arith.constant 0 : i32
    %c0_i32_0 = arith.constant 0 : i32
    %c0_i32_1 = arith.constant 0 : i32
    return %c0_i32, %c0_i32_0 : i32, i32
  }
  func.func @transform_11(%arg0: i32) -> (i32, i32) {
    %c0_i32 = arith.constant 0 : i32
    %c0_i32_0 = arith.constant 0 : i32
    %c0_i32_1 = arith.constant 0 : i32
    return %c0_i32, %c0_i32_0 : i32, i32
  }
  func.func @transform_12(%arg0: i32) -> (i32, i32) {
    %c0_i32 = arith.constant 0 : i32
    %c0_i32_0 = arith.constant 0 : i32
    %c0_i32_1 = arith.constant 0 : i32
    return %c0_i32, %c0_i32_0 : i32, i32
  }
  func.func @transform_13(%arg0: i32) -> (i32, i32) {
    %c0_i32 = arith.constant 0 : i32
    %c0_i32_0 = arith.constant 0 : i32
    %c0_i32_1 = arith.constant 0 : i32
    return %c0_i32, %c0_i32_0 : i32, i32
  }
  func.func @transform_14(%arg0: i32) -> (i32, i32) {
    %c0_i32 = arith.constant 0 : i32
    %c0_i32_0 = arith.constant 0 : i32
    %c0_i32_1 = arith.constant 0 : i32
    return %c0_i32, %c0_i32_0 : i32, i32
  }
  func.func @transform_15(%arg0: i32) -> (i32, i32) {
    %c0_i32 = arith.constant 0 : i32
    %c0_i32_0 = arith.constant 0 : i32
    %c0_i32_1 = arith.constant 0 : i32
    return %c0_i32, %c0_i32_0 : i32, i32
  }
  func.func @transform_16(%arg0: i32) -> (i32, i32) {
    %c0_i32 = arith.constant 0 : i32
    %c0_i32_0 = arith.constant 0 : i32
    %c0_i32_1 = arith.constant 0 : i32
    return %c0_i32, %c0_i32_0 : i32, i32
  }
  func.func @transform_17(%arg0: i32) -> (i32, i32) {
    %c0_i32 = arith.constant 0 : i32
    %c0_i32_0 = arith.constant 0 : i32
    %c0_i32_1 = arith.constant 0 : i32
    return %c0_i32, %c0_i32_0 : i32, i32
  }
  func.func @transform_18(%arg0: i32) -> (i32, i32) {
    %c0_i32 = arith.constant 0 : i32
    %c0_i32_0 = arith.constant 0 : i32
    %c0_i32_1 = arith.constant 0 : i32
    return %c0_i32, %c0_i32_0 : i32, i32
  }
  func.func @transform_19(%arg0: i32) -> (i32, i32) {
    %c0_i32 = arith.constant 0 : i32
    %c0_i32_0 = arith.constant 0 : i32
    %c0_i32_1 = arith.constant 0 : i32
    return %c0_i32, %c0_i32_0 : i32, i32
  }
  func.func @transform_20(%arg0: i32) -> (i32, i32) {
    %c0_i32 = arith.constant 0 : i32
    %c0_i32_0 = arith.constant 0 : i32
    %c0_i32_1 = arith.constant 0 : i32
    return %c0_i32, %c0_i32_0 : i32, i32
  }
  func.func @transform_21(%arg0: i32) -> (i32, i32) {
    %c0_i32 = arith.constant 0 : i32
    %c0_i32_0 = arith.constant 0 : i32
    %c0_i32_1 = arith.constant 0 : i32
    return %c0_i32, %c0_i32_0 : i32, i32
  }
  func.func @transform_22(%arg0: i32) -> (i32, i32) {
    %c0_i32 = arith.constant 0 : i32
    %c0_i32_0 = arith.constant 0 : i32
    %c0_i32_1 = arith.constant 0 : i32
    return %c0_i32, %c0_i32_0 : i32, i32
  }
  func.func @transform_23(%arg0: i32) -> (i32, i32) {
    %c0_i32 = arith.constant 0 : i32
    %c0_i32_0 = arith.constant 0 : i32
    %c0_i32_1 = arith.constant 0 : i32
    return %c0_i32, %c0_i32_0 : i32, i32
  }
  func.func @transform_24(%arg0: i32) -> (i32, i32) {
    %c0_i32 = arith.constant 0 : i32
    %c0_i32_0 = arith.constant 0 : i32
    %c0_i32_1 = arith.constant 0 : i32
    return %c0_i32, %c0_i32_0 : i32, i32
  }
  func.func @transform_25(%arg0: i32) -> (i32, i32) {
    %c0_i32 = arith.constant 0 : i32
    %c0_i32_0 = arith.constant 0 : i32
    %c0_i32_1 = arith.constant 0 : i32
    return %c0_i32, %c0_i32_0 : i32, i32
  }
  func.func @transform_26(%arg0: i32) -> (i32, i32) {
    %c0_i32 = arith.constant 0 : i32
    %c0_i32_0 = arith.constant 0 : i32
    %c0_i32_1 = arith.constant 0 : i32
    return %c0_i32, %c0_i32_0 : i32, i32
  }
  func.func @transform_27(%arg0: i32) -> (i32, i32) {
    %c0_i32 = arith.constant 0 : i32
    %c0_i32_0 = arith.constant 0 : i32
    %c0_i32_1 = arith.constant 0 : i32
    return %c0_i32, %c0_i32_0 : i32, i32
  }
  func.func @transform_28(%arg0: i32) -> (i32, i32) {
    %c0_i32 = arith.constant 0 : i32
    %c0_i32_0 = arith.constant 0 : i32
    %c0_i32_1 = arith.constant 0 : i32
    return %c0_i32, %c0_i32_0 : i32, i32
  }
  func.func @transform_29(%arg0: i32) -> (i32, i32) {
    %c0_i32 = arith.constant 0 : i32
    %c0_i32_0 = arith.constant 0 : i32
    %c0_i32_1 = arith.constant 0 : i32
    return %c0_i32, %c0_i32_0 : i32, i32
  }
  func.func @transform_30(%arg0: i32) -> (i32, i32) {
    %c0_i32 = arith.constant 0 : i32
    %c0_i32_0 = arith.constant 0 : i32
    %c0_i32_1 = arith.constant 0 : i32
    return %c0_i32, %c0_i32_0 : i32, i32
  }
  func.func @transform_31(%arg0: i32) -> (i32, i32) {
    %c0_i32 = arith.constant 0 : i32
    %c0_i32_0 = arith.constant 0 : i32
    %c0_i32_1 = arith.constant 0 : i32
    return %c0_i32, %c0_i32_0 : i32, i32
  }
  func.func @transform_32(%arg0: i32) -> (i32, i32) {
    %c0_i32 = arith.constant 0 : i32
    %c0_i32_0 = arith.constant 0 : i32
    return %arg0, %c0_i32 : i32, i32
  }
}

</mosaic_0001>

<llo_original>
// kernel: ple_forward.1
$region0: #{ple_forward.1}
  #allocation0 [shape = 'u32[]', space=smem, size = 0x4, offset = 0x4, fixed_abs, tag = 'smem constant byte address 0x4 - core index']
  #allocation1 [shape = 'u32[144,128]{1,0:T(1,128)}', space=vmem, size = 0x12000, scoped, tag = 'internal scratch']
  #allocation2 [shape = 'f32[1,1]{1,0:T(1,128)S(1)}', space=vmem, size = 0x200, scoped, tag = 'scoped memory for ple_forward.1']
  #allocation3 [shape = 'f32[1,1]{1,0:T(1,128)S(1)}', space=vmem, size = 0x200, scoped, tag = 'scoped memory for ple_forward.1']
  %s0 = inlined_call_operand.smem [shape: u32[33], index: -1, kind: input, shape index: {}]
  %s1 = sld [smem:[%s0]]
  %s2 = scalar_lea.smem %s0, 1
  %s3 = sld [smem:[%s2]]
  %s4 = scalar_lea.smem %s0, 2
  %s5 = sld [smem:[%s4]]
  %s6 = scalar_lea.smem %s0, 3
  %s7 = sld [smem:[%s6]]
  %s8 = scalar_lea.smem %s0, 4
  %s9 = sld [smem:[%s8]]
  %s10 = scalar_lea.smem %s0, 5
  %s11 = sld [smem:[%s10]]
  %s12 = scalar_lea.smem %s0, 6
  %s13 = sld [smem:[%s12]]
  %s14 = scalar_lea.smem %s0, 7
  %s15 = sld [smem:[%s14]]
  %s16 = scalar_lea.smem %s0, 8
  %s17 = sld [smem:[%s16]]
  %s18 = scalar_lea.smem %s0, 9
  %s19 = sld [smem:[%s18]]
  %s20 = scalar_lea.smem %s0, 10
  %s21 = sld [smem:[%s20]]
  %s22 = scalar_lea.smem %s0, 11
  %s23 = sld [smem:[%s22]]
  %s24 = scalar_lea.smem %s0, 12
  %s25 = sld [smem:[%s24]]
  %s26 = scalar_lea.smem %s0, 13
  %s27 = sld [smem:[%s26]]
  %s28 = scalar_lea.smem %s0, 14
  %s29 = sld [smem:[%s28]]
  %s30 = scalar_lea.smem %s0, 15
  %s31 = sld [smem:[%s30]]
  %s32 = scalar_lea.smem %s0, 16
  %s33 = sld [smem:[%s32]]
  %s34 = scalar_lea.smem %s0, 17
  %s35 = sld [smem:[%s34]]
  %s36 = scalar_lea.smem %s0, 18
  %s37 = sld [smem:[%s36]]
  %s38 = scalar_lea.smem %s0, 19
  %s39 = sld [smem:[%s38]]
  %s40 = scalar_lea.smem %s0, 20
  %s41 = sld [smem:[%s40]]
  %s42 = scalar_lea.smem %s0, 21
  %s43 = sld [smem:[%s42]]
  %s44 = scalar_lea.smem %s0, 22
  %s45 = sld [smem:[%s44]]
  %s46 = scalar_lea.smem %s0, 23
  %s47 = sld [smem:[%s46]]
  %s48 = scalar_lea.smem %s0, 24
  %s49 = sld [smem:[%s48]]
  %s50 = scalar_lea.smem %s0, 25
  %s51 = sld [smem:[%s50]]
  %s52 = scalar_lea.smem %s0, 26
  %s53 = sld [smem:[%s52]]
  %s54 = scalar_lea.smem %s0, 27
  %s55 = sld [smem:[%s54]]
  %s56 = scalar_lea.smem %s0, 28
  %s57 = sld [smem:[%s56]]
  %s58 = scalar_lea.smem %s0, 29
  %s59 = sld [smem:[%s58]]
  %s60 = scalar_lea.smem %s0, 30
  %s61 = sld [smem:[%s60]]
  %s62 = scalar_lea.smem %s0, 31
  %s63 = sld [smem:[%s62]]
  %s64 = scalar_lea.smem %s0, 32
  %s65 = sld [smem:[%s64]]
  %s66 = sld [smem:[#allocation0]]
  $region138: #{ple_forward.1} parent=0
    _
  %s68 = ssub.s32 1, %s66
  %s69 = scalar_select 0, %s68, %s66
  %v70 = vstv %s51
  %71 = vst [vmem:[#allocation2] sm:$0x1] %v70
  %v72 = vstv %s63
  %73 = vst [vmem:[#allocation3] sm:$0x1] %v72
  // Predicated region
  $region2: #{ple_forward.1} parent=0 // pred_check
    _
  $region3: #{ple_forward.1} parent=0 // pred_check_branch
    %75 = sbr.rel (0) target = $region5
  $region4: #{ple_forward.1} parent=0 // pred_region
    _
  $region5: #{ple_forward.1} parent=0 // pred_fallthru
    _
  // Predicated region
  $region6: #{ple_forward.1} parent=0 // pred_check
    _
  $region7: #{ple_forward.1} parent=0 // pred_check_branch
    %77 = sbr.rel (0) target = $region9
  $region8: #{ple_forward.1} parent=0 // pred_region
    _
  $region9: #{ple_forward.1} parent=0 // pred_fallthru
    _
  // Predicated region
  $region10: #{ple_forward.1} parent=0 // pred_check
    _
  $region11: #{ple_forward.1} parent=0 // pred_check_branch
    %79 = sbr.rel (0) target = $region13
  $region12: #{ple_forward.1} parent=0 // pred_region
    _
  $region13: #{ple_forward.1} parent=0 // pred_fallthru
    _
  // Predicated region
  $region14: #{ple_forward.1} parent=0 // pred_check
    _
  $region15: #{ple_forward.1} parent=0 // pred_check_branch
    %81 = sbr.rel (0) target = $region17
  $region16: #{ple_forward.1} parent=0 // pred_region
    _
  $region17: #{ple_forward.1} parent=0 // pred_fallthru
    _
  // Predicated region
  $region18: #{ple_forward.1} parent=0 // pred_check
    _
  $region19: #{ple_forward.1} parent=0 // pred_check_branch
    %83 = sbr.rel (0) target = $region21
  $region20: #{ple_forward.1} parent=0 // pred_region
    _
  $region21: #{ple_forward.1} parent=0 // pred_fallthru
    _
  // Predicated region
  $region22: #{ple_forward.1} parent=0 // pred_check
    _
  $region23: #{ple_forward.1} parent=0 // pred_check_branch
    %85 = sbr.rel (0) target = $region25
  $region24: #{ple_forward.1} parent=0 // pred_region
    _
  $region25: #{ple_forward.1} parent=0 // pred_fallthru
    _
  // Predicated region
  $region26: #{ple_forward.1} parent=0 // pred_check
    _
  $region27: #{ple_forward.1} parent=0 // pred_check_branch
    %87 = sbr.rel (0) target = $region29
  $region28: #{ple_forward.1} parent=0 // pred_region
    _
  $region29: #{ple_forward.1} parent=0 // pred_fallthru
    _
  // Predicated region
  $region30: #{ple_forward.1} parent=0 // pred_check
    _
  $region31: #{ple_forward.1} parent=0 // pred_check_branch
    %89 = sbr.rel (0) target = $region33
  $region32: #{ple_forward.1} parent=0 // pred_region
    _
  $region33: #{ple_forward.1} parent=0 // pred_fallthru
    _
  // Predicated region
  $region34: #{ple_forward.1} parent=0 // pred_check
    _
  $region35: #{ple_forward.1} parent=0 // pred_check_branch
    %91 = sbr.rel (0) target = $region37
  $region36: #{ple_forward.1} parent=0 // pred_region
    _
  $region37: #{ple_forward.1} parent=0 // pred_fallthru
    _
  // Predicated region
  $region38: #{ple_forward.1} parent=0 // pred_check
    _
  $region39: #{ple_forward.1} parent=0 // pred_check_branch
    %93 = sbr.rel (0) target = $region41
  $region40: #{ple_forward.1} parent=0 // pred_region
    _
  $region41: #{ple_forward.1} parent=0 // pred_fallthru
    _
  // Predicated region
  $region42: #{ple_forward.1} parent=0 // pred_check
    _
  $region43: #{ple_forward.1} parent=0 // pred_check_branch
    %95 = sbr.rel (0) target = $region45
  $region44: #{ple_forward.1} parent=0 // pred_region
    _
  $region45: #{ple_forward.1} parent=0 // pred_fallthru
    _
  // Predicated region
  $region46: #{ple_forward.1} parent=0 // pred_check
    _
  $region47: #{ple_forward.1} parent=0 // pred_check_branch
    %97 = sbr.rel (0) target = $region49
  $region48: #{ple_forward.1} parent=0 // pred_region
    _
  $region49: #{ple_forward.1} parent=0 // pred_fallthru
    _
  // Predicated region
  $region50: #{ple_forward.1} parent=0 // pred_check
    _
  $region51: #{ple_forward.1} parent=0 // pred_check_branch
    %99 = sbr.rel (0) target = $region53
  $region52: #{ple_forward.1} parent=0 // pred_region
    _
  $region53: #{ple_forward.1} parent=0 // pred_fallthru
    _
  // Predicated region
  $region54: #{ple_forward.1} parent=0 // pred_check
    _
  $region55: #{ple_forward.1} parent=0 // pred_check_branch
    %101 = sbr.rel (0) target = $region57
  $region56: #{ple_forward.1} parent=0 // pred_region
    _
  $region57: #{ple_forward.1} parent=0 // pred_fallthru
    _
  // Predicated region
  $region58: #{ple_forward.1} parent=0 // pred_check
    _
  $region59: #{ple_forward.1} parent=0 // pred_check_branch
    %103 = sbr.rel (0) target = $region61
  $region60: #{ple_forward.1} parent=0 // pred_region
    _
  $region61: #{ple_forward.1} parent=0 // pred_fallthru
    _
  // Predicated region
  $region62: #{ple_forward.1} parent=0 // pred_check
    _
  $region63: #{ple_forward.1} parent=0 // pred_check_branch
    %105 = sbr.rel (0) target = $region65
  $region64: #{ple_forward.1} parent=0 // pred_region
    _
  $region65: #{ple_forward.1} parent=0 // pred_fallthru
    _
  // Predicated region
  $region66: #{ple_forward.1} parent=0 // pred_check
    _
  $region67: #{ple_forward.1} parent=0 // pred_check_branch
    %107 = sbr.rel (0) target = $region69
  $region68: #{ple_forward.1} parent=0 // pred_region
    _
  $region69: #{ple_forward.1} parent=0 // pred_fallthru
    _
  // Predicated region
  $region70: #{ple_forward.1} parent=0 // pred_check
    _
  $region71: #{ple_forward.1} parent=0 // pred_check_branch
    %109 = sbr.rel (0) target = $region73
  $region72: #{ple_forward.1} parent=0 // pred_region
    _
  $region73: #{ple_forward.1} parent=0 // pred_fallthru
    _
  // Predicated region
  $region74: #{ple_forward.1} parent=0 // pred_check
    _
  $region75: #{ple_forward.1} parent=0 // pred_check_branch
    %111 = sbr.rel (0) target = $region77
  $region76: #{ple_forward.1} parent=0 // pred_region
    _
  $region77: #{ple_forward.1} parent=0 // pred_fallthru
    _
  // Predicated region
  $region78: #{ple_forward.1} parent=0 // pred_check
    _
  $region79: #{ple_forward.1} parent=0 // pred_check_branch
    %113 = sbr.rel (0) target = $region81
  $region80: #{ple_forward.1} parent=0 // pred_region
    _
  $region81: #{ple_forward.1} parent=0 // pred_fallthru
    _
  // Predicated region
  $region82: #{ple_forward.1} parent=0 // pred_check
    _
  $region83: #{ple_forward.1} parent=0 // pred_check_branch
    %115 = sbr.rel (0) target = $region85
  $region84: #{ple_forward.1} parent=0 // pred_region
    _
  $region85: #{ple_forward.1} parent=0 // pred_fallthru
    _
  // Predicated region
  $region86: #{ple_forward.1} parent=0 // pred_check
    _
  $region87: #{ple_forward.1} parent=0 // pred_check_branch
    %117 = sbr.rel (0) target = $region89
  $region88: #{ple_forward.1} parent=0 // pred_region
    _
  $region89: #{ple_forward.1} parent=0 // pred_fallthru
    _
  // Predicated region
  $region90: #{ple_forward.1} parent=0 // pred_check
    _
  $region91: #{ple_forward.1} parent=0 // pred_check_branch
    %119 = sbr.rel (0) target = $region93
  $region92: #{ple_forward.1} parent=0 // pred_region
    _
  $region93: #{ple_forward.1} parent=0 // pred_fallthru
    _
  // Predicated region
  $region94: #{ple_forward.1} parent=0 // pred_check
    _
  $region95: #{ple_forward.1} parent=0 // pred_check_branch
    %121 = sbr.rel (0) target = $region97
  $region96: #{ple_forward.1} parent=0 // pred_region
    _
  $region97: #{ple_forward.1} parent=0 // pred_fallthru
    _
  // Predicated region
  $region98: #{ple_forward.1} parent=0 // pred_check
    _
  $region99: #{ple_forward.1} parent=0 // pred_check_branch
    %123 = sbr.rel (0) target = $region101
  $region100: #{ple_forward.1} parent=0 // pred_region
    _
  $region101: #{ple_forward.1} parent=0 // pred_fallthru
    _
  // Predicated region
  $region102: #{ple_forward.1} parent=0 // pred_check
    _
  $region103: #{ple_forward.1} parent=0 // pred_check_branch
    %125 = sbr.rel (0) target = $region105
  $region104: #{ple_forward.1} parent=0 // pred_region
    _
  $region105: #{ple_forward.1} parent=0 // pred_fallthru
    _
  // Predicated region
  $region106: #{ple_forward.1} parent=0 // pred_check
    _
  $region107: #{ple_forward.1} parent=0 // pred_check_branch
    %127 = sbr.rel (0) target = $region109
  $region108: #{ple_forward.1} parent=0 // pred_region
    _
  $region109: #{ple_forward.1} parent=0 // pred_fallthru
    _
  // Predicated region
  $region110: #{ple_forward.1} parent=0 // pred_check
    _
  $region111: #{ple_forward.1} parent=0 // pred_check_branch
    %129 = sbr.rel (0) target = $region113
  $region112: #{ple_forward.1} parent=0 // pred_region
    _
  $region113: #{ple_forward.1} parent=0 // pred_fallthru
    _
  // Predicated region
  $region114: #{ple_forward.1} parent=0 // pred_check
    _
  $region115: #{ple_forward.1} parent=0 // pred_check_branch
    %131 = sbr.rel (0) target = $region117
  $region116: #{ple_forward.1} parent=0 // pred_region
    _
  $region117: #{ple_forward.1} parent=0 // pred_fallthru
    _
  // Predicated region
  $region118: #{ple_forward.1} parent=0 // pred_check
    _
  $region119: #{ple_forward.1} parent=0 // pred_check_branch
    %133 = sbr.rel (0) target = $region121
  $region120: #{ple_forward.1} parent=0 // pred_region
    _
  $region121: #{ple_forward.1} parent=0 // pred_fallthru
    _
  // Predicated region
  $region122: #{ple_forward.1} parent=0 // pred_check
    _
  $region123: #{ple_forward.1} parent=0 // pred_check_branch
    %135 = sbr.rel (0) target = $region125
  $region124: #{ple_forward.1} parent=0 // pred_region
    _
  $region125: #{ple_forward.1} parent=0 // pred_fallthru
    _
  // Predicated region
  $region126: #{ple_forward.1} parent=0 // pred_check
    _
  $region127: #{ple_forward.1} parent=0 // pred_check_branch
    %137 = sbr.rel (0) target = $region129
  $region128: #{ple_forward.1} parent=0 // pred_region
    _
  $region129: #{ple_forward.1} parent=0 // pred_fallthru
    _
  %v138 = vld [vmem:[%s1] sm:$0xff]
  %v139 = vld [vmem:[%s3] sm:$0xff]
  %v140 = vld [vmem:[%s5] sm:$0x1f]
  %vm141 = vcmask 39936
  %v143 = vsel %vm141, %v139, 0
  %vm145 = vcmask 1044480
  %v147 = vsel %vm145, %v140, 0
  %149 = vmatprep.subr.mxu0 0.0
  %150 = vmatpush1.msra.mxu0 %v147
  %151 = vmatprep.subr.mxu0 0.0
  %152 = vmatpush1.msra.mxu0 0.0
  %153 = vmatprep.subr.mxu0 0.0
  %154 = vmatpush1.msra.mxu0 0.0
  %155 = vmatprep.subr.mxu0 0.0
  %156 = vmatpush1.msra.mxu0 0.0
  %157 = vmatprep.subr.mxu0 0.0
  %158 = vmatpush1.msra.mxu0 0.0
  %159 = vmatprep.subr.mxu0 0.0
  %160 = vmatpush1.msra.mxu0 0.0
  %161 = vmatprep.subr.mxu0 0.0
  %162 = vmatpush1.msra.mxu0 0.0
  %163 = vmatprep.subr.mxu0 0.0
  %164 = vmatpush1.msra.mxu0 0.0
  %165 = vmatprep.subr.mxu0 0.0
  %166 = vmatpush1.msra.mxu0 0.0
  %167 = vmatprep.subr.mxu0 0.0
  %168 = vmatpush1.msra.mxu0 0.0
  %169 = vmatprep.subr.mxu0 0.0
  %170 = vmatpush1.msra.mxu0 0.0
  %171 = vmatprep.subr.mxu0 0.0
  %172 = vmatpush1.msra.mxu0 0.0
  %173 = vmatprep.subr.mxu0 0.0
  %174 = vmatpush1.msra.mxu0 0.0
  %175 = vmatprep.subr.mxu0 0.0
  %176 = vmatpush1.msra.mxu0 0.0
  %177 = vmatprep.subr.mxu0 0.0
  %178 = vmatpush1.msra.mxu0 0.0
  %179 = vmatprep.subr.mxu0 0.0
  %180 = vmatpush1.msra.mxu0 0.0
  %181 = vmatprep.subr.mxu0 0.0
  %182 = vmatpush1.msra.mxu0 0.0
  %183 = vmatprep.subr.mxu0 0.0
  %184 = vmatpush1.msra.mxu0 0.0
  %185 = vmatprep.subr.mxu0 0.0
  %186 = vmatpush1.msra.mxu0 0.0
  %187 = vmatprep.subr.mxu0 0.0
  %188 = vmatpush1.msra.mxu0 0.0
  %189 = vmatprep.subr.mxu0 0.0
  %190 = vmatpush1.msra.mxu0 0.0
  %191 = vmatprep.subr.mxu0 0.0
  %192 = vmatpush1.msra.mxu0 0.0
  %193 = vmatprep.subr.mxu0 0.0
  %194 = vmatpush1.msra.mxu0 0.0
  %195 = vmatprep.subr.mxu0 0.0
  %196 = vmatpush1.msra.mxu0 0.0
  %197 = vmatprep.subr.mxu0 0.0
  %198 = vmatpush1.msra.mxu0 0.0
  %199 = vmatprep.subr.mxu0 0.0
  %200 = vmatpush1.msra.mxu0 0.0
  %201 = vmatprep.subr.mxu0 0.0
  %202 = vmatpush1.msra.mxu0 0.0
  %203 = vmatprep.subr.mxu0 0.0
  %204 = vmatpush1.msra.mxu0 0.0
  %205 = vmatprep.subr.mxu0 0.0
  %206 = vmatpush1.msra.mxu0 0.0
  %207 = vmatprep.subr.mxu0 0.0
  %208 = vmatpush1.msra.mxu0 0.0
  %209 = vmatprep.subr.mxu0 0.0
  %210 = vmatpush1.msra.mxu0 0.0
  %211 = vmatprep.subr.mxu0 0.0
  %212 = vmatpush1.msra.mxu0 0.0
  %213 = vmatprep.mubr.f32.mxu0 0.0
  %214 = vmatmul.mubr.f32.gmra.mrb[0].mxu0 %v143
  %v215 = vpop.f32.mrb[0].mxu0
  %v216 = vadd.f32 0.0, %v215
  %v217 = vpop.f32.mrb[0].mxu0
  %218 = vdwg.mxu0
  %v219 = vadd.f32 %v138, %v216
  %v220 = vld [vmem:[%s7] sm:$0x1]
  %v222 = vlaneseq
  %v223 = vshrl.u32 %v222, 7
  %v224 = vsub.s32 0, %v223
  %v225 = vrot.slane %v220, %v224
  %v227 = vadd.f32 %v219, %v225
  %v228 = vld [vmem:[%s9] sm:$0xff]
  %v229 = vld [vmem:[%s9 + $0x8] sm:$0xff]
  %v230 = vld [vmem:[%s9 + $0x10] sm:$0xff]
  %v231 = vld [vmem:[%s9 + $0x18] sm:$0xff]
  %v232 = vld [vmem:[%s9 + $0x20] sm:$0xff]
  %v233 = vld [vmem:[%s9 + $0x28] sm:$0xff]
  %v234 = vld [vmem:[%s9 + $0x30] sm:$0xff]
  %v235 = vld [vmem:[%s9 + $0x38] sm:$0xff]
  %v236 = vld [vmem:[%s9 + $0x40] sm:$0xff]
  %v237 = vld [vmem:[%s9 + $0x48] sm:$0xff]
  %v238 = vld [vmem:[%s9 + $0x50] sm:$0xff]
  %v239 = vld [vmem:[%s9 + $0x58] sm:$0xff]
  %v240 = vld [vmem:[%s9 + $0x60] sm:$0xff]
  %v241 = vld [vmem:[%s9 + $0x68] sm:$0xff]
  %v242 = vld [vmem:[%s9 + $0x70] sm:$0xff]
  %v243 = vld [vmem:[%s9 + $0x78] sm:$0xff]
  %v244 = vld [vmem:[%s11] sm:$0x3]
  %v246 = vlaneseq
  %v247 = vshrl.u32 %v246, 7
  %v248 = vsub.s32 0, %v247
  %v249 = vrot.slane %v244, %v248
  %v250 = vlaneseq
  %v251 = vshrl.u32 %v250, 7
  %v252 = vsub.s32 1, %v251
  %v253 = vrot.slane %v244, %v252
  %vm256 = vcmask 523264
  %v258 = vsel %vm256, %v227, 0
  %260 = vmatprep.subr.mxu0 %v229
  %261 = vmatpush1.msra.mxu0 %v228
  %262 = vmatprep.subr.mxu0 %v231
  %263 = vmatpush1.msra.mxu0 %v230
  %264 = vmatprep.subr.mxu0 %v233
  %265 = vmatpush1.msra.mxu0 %v232
  %266 = vmatprep.subr.mxu0 %v235
  %267 = vmatpush1.msra.mxu0 %v234
  %268 = vmatprep.subr.mxu0 %v237
  %269 = vmatpush1.msra.mxu0 %v236
  %270 = vmatprep.subr.mxu0 %v239
  %271 = vmatpush1.msra.mxu0 %v238
  %272 = vmatprep.subr.mxu0 %v241
  %273 = vmatpush1.msra.mxu0 %v240
  %274 = vmatprep.subr.mxu0 %v243
  %275 = vmatpush1.msra.mxu0 %v242
  %276 = vmatprep.subr.mxu0 0.0
  %277 = vmatpush1.msra.mxu0 0.0
  %278 = vmatprep.subr.mxu0 0.0
  %279 = vmatpush1.msra.mxu0 0.0
  %280 = vmatprep.subr.mxu0 0.0
  %281 = vmatpush1.msra.mxu0 0.0
  %282 = vmatprep.subr.mxu0 0.0
  %283 = vmatpush1.msra.mxu0 0.0
  %284 = vmatprep.subr.mxu0 0.0
  %285 = vmatpush1.msra.mxu0 0.0
  %286 = vmatprep.subr.mxu0 0.0
  %287 = vmatpush1.msra.mxu0 0.0
  %288 = vmatprep.subr.mxu0 0.0
  %289 = vmatpush1.msra.mxu0 0.0
  %290 = vmatprep.subr.mxu0 0.0
  %291 = vmatpush1.msra.mxu0 0.0
  %292 = vmatprep.subr.mxu0 0.0
  %293 = vmatpush1.msra.mxu0 0.0
  %294 = vmatprep.subr.mxu0 0.0
  %295 = vmatpush1.msra.mxu0 0.0
  %296 = vmatprep.subr.mxu0 0.0
  %297 = vmatpush1.msra.mxu0 0.0
  %298 = vmatprep.subr.mxu0 0.0
  %299 = vmatpush1.msra.mxu0 0.0
  %300 = vmatprep.subr.mxu0 0.0
  %301 = vmatpush1.msra.mxu0 0.0
  %302 = vmatprep.subr.mxu0 0.0
  %303 = vmatpush1.msra.mxu0 0.0
  %304 = vmatprep.subr.mxu0 0.0
  %305 = vmatpush1.msra.mxu0 0.0
  %306 = vmatprep.subr.mxu0 0.0
  %307 = vmatpush1.msra.mxu0 0.0
  %308 = vmatprep.subr.mxu0 0.0
  %309 = vmatpush1.msra.mxu0 0.0
  %310 = vmatprep.subr.mxu0 0.0
  %311 = vmatpush1.msra.mxu0 0.0
  %312 = vmatprep.subr.mxu0 0.0
  %313 = vmatpush1.msra.mxu0 0.0
  %314 = vmatprep.subr.mxu0 0.0
  %315 = vmatpush1.msra.mxu0 0.0
  %316 = vmatprep.subr.mxu0 0.0
  %317 = vmatpush1.msra.mxu0 0.0
  %318 = vmatprep.subr.mxu0 0.0
  %319 = vmatpush1.msra.mxu0 0.0
  %320 = vmatprep.subr.mxu0 0.0
  %321 = vmatpush1.msra.mxu0 0.0
  %322 = vmatprep.subr.mxu0 0.0
  %323 = vmatpush1.msra.mxu0 0.0
  %324 = vmatprep.mubr.f32.mxu0 0.0
  %325 = vmatmul.mubr.f32.gmra.mrb[0].mxu0 %v258
  %v326 = vpop.f32.mrb[0].mxu0
  %v327 = vadd.f32 %v249, %v326
  %v328 = vpop.f32.mrb[0].mxu0
  %v329 = vadd.f32 %v253, %v328
  %330 = vdwg.mxu0
  %v331 = vmul.f32 %v327, 0.999995
  %v332 = vmul.f32 %v329, 0.999995
  %v333 = vmax.f32 %v331, 0.0
  %v334 = vmax.f32 %v332, 0.0
  %v335 = vld [vmem:[%s13] sm:$0xff]
  %v336 = vld [vmem:[%s13 + $0x8] sm:$0xff]
  %v337 = vld [vmem:[%s13 + $0x10] sm:$0xff]
  %v338 = vld [vmem:[%s13 + $0x18] sm:$0xff]
  %v339 = vld [vmem:[%s13 + $0x20] sm:$0xff]
  %v340 = vld [vmem:[%s13 + $0x28] sm:$0xff]
  %v341 = vld [vmem:[%s13 + $0x30] sm:$0xff]
  %v342 = vld [vmem:[%s13 + $0x38] sm:$0xff]
  %v343 = vld [vmem:[%s15] sm:$0x1]
  %v345 = vlaneseq
  %v346 = vshrl.u32 %v345, 7
  %v347 = vsub.s32 0, %v346
  %v348 = vrot.slane %v343, %v347
  %350 = vmatprep.subr.mxu0 0.0
  %351 = vmatpush1.msra.mxu0 %v335
  %352 = vmatprep.subr.mxu0 0.0
  %353 = vmatpush1.msra.mxu0 %v336
  %354 = vmatprep.subr.mxu0 0.0
  %355 = vmatpush1.msra.mxu0 %v337
  %356 = vmatprep.subr.mxu0 0.0
  %357 = vmatpush1.msra.mxu0 %v338
  %358 = vmatprep.subr.mxu0 0.0
  %359 = vmatpush1.msra.mxu0 %v339
  %360 = vmatprep.subr.mxu0 0.0
  %361 = vmatpush1.msra.mxu0 %v340
  %362 = vmatprep.subr.mxu0 0.0
  %363 = vmatpush1.msra.mxu0 %v341
  %364 = vmatprep.subr.mxu0 0.0
  %365 = vmatpush1.msra.mxu0 %v342
  %366 = vmatprep.subr.mxu0 0.0
  %367 = vmatpush1.msra.mxu0 0.0
  %368 = vmatprep.subr.mxu0 0.0
  %369 = vmatpush1.msra.mxu0 0.0
  %370 = vmatprep.subr.mxu0 0.0
  %371 = vmatpush1.msra.mxu0 0.0
  %372 = vmatprep.subr.mxu0 0.0
  %373 = vmatpush1.msra.mxu0 0.0
  %374 = vmatprep.subr.mxu0 0.0
  %375 = vmatpush1.msra.mxu0 0.0
  %376 = vmatprep.subr.mxu0 0.0
  %377 = vmatpush1.msra.mxu0 0.0
  %378 = vmatprep.subr.mxu0 0.0
  %379 = vmatpush1.msra.mxu0 0.0
  %380 = vmatprep.subr.mxu0 0.0
  %381 = vmatpush1.msra.mxu0 0.0
  %382 = vmatprep.subr.mxu0 0.0
  %383 = vmatpush1.msra.mxu0 0.0
  %384 = vmatprep.subr.mxu0 0.0
  %385 = vmatpush1.msra.mxu0 0.0
  %386 = vmatprep.subr.mxu0 0.0
  %387 = vmatpush1.msra.mxu0 0.0
  %388 = vmatprep.subr.mxu0 0.0
  %389 = vmatpush1.msra.mxu0 0.0
  %390 = vmatprep.subr.mxu0 0.0
  %391 = vmatpush1.msra.mxu0 0.0
  %392 = vmatprep.subr.mxu0 0.0
  %393 = vmatpush1.msra.mxu0 0.0
  %394 = vmatprep.subr.mxu0 0.0
  %395 = vmatpush1.msra.mxu0 0.0
  %396 = vmatprep.subr.mxu0 0.0
  %397 = vmatpush1.msra.mxu0 0.0
  %398 = vmatprep.subr.mxu0 0.0
  %399 = vmatpush1.msra.mxu0 0.0
  %400 = vmatprep.subr.mxu0 0.0
  %401 = vmatpush1.msra.mxu0 0.0
  %402 = vmatprep.subr.mxu0 0.0
  %403 = vmatpush1.msra.mxu0 0.0
  %404 = vmatprep.subr.mxu0 0.0
  %405 = vmatpush1.msra.mxu0 0.0
  %406 = vmatprep.subr.mxu0 0.0
  %407 = vmatpush1.msra.mxu0 0.0
  %408 = vmatprep.subr.mxu0 0.0
  %409 = vmatpush1.msra.mxu0 0.0
  %410 = vmatprep.subr.mxu0 0.0
  %411 = vmatpush1.msra.mxu0 0.0
  %412 = vmatprep.subr.mxu0 0.0
  %413 = vmatpush1.msra.mxu0 0.0
  %414 = vmatprep.mubr.f32.mxu0 0.0
  %415 = vmatmul.mubr.f32.gmra.mrb[0].mxu0 %v258
  %v416 = vpop.f32.mrb[0].mxu0
  %v417 = vadd.f32 %v348, %v416
  %v418 = vpop.f32.mrb[0].mxu0
  %419 = vdwg.mxu0
  %vm420 = vcmask 23552
  %v421 = vsel %vm420, %v417, -inf
  %422 = vmax.xlane.f32.xlu0 %v421
  %v423 = vpop.xlane.xlu0 %422
  %v424 = vsub.f32 %v417, %v423
  %v425 = vmul.f32 %v424, 1.442695
  %v426 = vpow.pop %v425
  %v427 = vsel %vm420, %v426, 0.0
  %428 = vadd.xlane.f32.xlu0 %v427
  %v429 = vpop.xlane.xlu0 %428
  %v430 = vrcp.pop %v429
  %v431 = vmul.f32 %v426, %v430
  %433 = vset.pattern.permute.xlu0 0
  %434 = vperm.xlu0 %433, %v431
  %v435 = vpop.permute.xlu0 %434
  %v437 = vmul.f32 %v435, %v333
  %v438 = vadd.f32 %v437, 0.0
  %439 = vset.pattern.permute.xlu0 1
  %440 = vperm.xlu0 %439, %v431
  %v441 = vpop.permute.xlu0 %440
  %v443 = vmul.f32 %v441, %v333
  %445 = vrot.lane.b32.xlu0 %v443, 96
  %v446 = vpop.permute.xlu0 %445
  %v448 = vadd.f32 %v438, %v446
  %449 = vset.pattern.permute.xlu0 2
  %450 = vperm.xlu0 %449, %v431
  %v451 = vpop.permute.xlu0 %450
  %v453 = vmul.f32 %v451, %v334
  %v454 = vadd.f32 %v448, %v453
  %v455 = vld [vmem:[%s17] sm:$0xff]
  %v456 = vld [vmem:[%s17 + $0x8] sm:$0xff]
  %v457 = vld [vmem:[%s17 + $0x10] sm:$0xff]
  %v458 = vld [vmem:[%s17 + $0x18] sm:$0xff]
  %v459 = vld [vmem:[%s17 + $0x20] sm:$0xff]
  %v460 = vld [vmem:[%s17 + $0x28] sm:$0xff]
  %v461 = vld [vmem:[%s17 + $0x30] sm:$0xff]
  %v462 = vld [vmem:[%s17 + $0x38] sm:$0xff]
  %v463 = vld [vmem:[%s19] sm:$0x1]
  %v465 = vlaneseq
  %v466 = vshrl.u32 %v465, 7
  %v467 = vsub.s32 0, %v466
  %v468 = vrot.slane %v463, %v467
  %470 = vmatprep.subr.mxu0 0.0
  %471 = vmatpush1.msra.mxu0 %v455
  %472 = vmatprep.subr.mxu0 0.0
  %473 = vmatpush1.msra.mxu0 %v456
  %474 = vmatprep.subr.mxu0 0.0
  %475 = vmatpush1.msra.mxu0 %v457
  %476 = vmatprep.subr.mxu0 0.0
  %477 = vmatpush1.msra.mxu0 %v458
  %478 = vmatprep.subr.mxu0 0.0
  %479 = vmatpush1.msra.mxu0 %v459
  %480 = vmatprep.subr.mxu0 0.0
  %481 = vmatpush1.msra.mxu0 %v460
  %482 = vmatprep.subr.mxu0 0.0
  %483 = vmatpush1.msra.mxu0 %v461
  %484 = vmatprep.subr.mxu0 0.0
  %485 = vmatpush1.msra.mxu0 %v462
  %486 = vmatprep.subr.mxu0 0.0
  %487 = vmatpush1.msra.mxu0 0.0
  %488 = vmatprep.subr.mxu0 0.0
  %489 = vmatpush1.msra.mxu0 0.0
  %490 = vmatprep.subr.mxu0 0.0
  %491 = vmatpush1.msra.mxu0 0.0
  %492 = vmatprep.subr.mxu0 0.0
  %493 = vmatpush1.msra.mxu0 0.0
  %494 = vmatprep.subr.mxu0 0.0
  %495 = vmatpush1.msra.mxu0 0.0
  %496 = vmatprep.subr.mxu0 0.0
  %497 = vmatpush1.msra.mxu0 0.0
  %498 = vmatprep.subr.mxu0 0.0
  %499 = vmatpush1.msra.mxu0 0.0
  %500 = vmatprep.subr.mxu0 0.0
  %501 = vmatpush1.msra.mxu0 0.0
  %502 = vmatprep.subr.mxu0 0.0
  %503 = vmatpush1.msra.mxu0 0.0
  %504 = vmatprep.subr.mxu0 0.0
  %505 = vmatpush1.msra.mxu0 0.0
  %506 = vmatprep.subr.mxu0 0.0
  %507 = vmatpush1.msra.mxu0 0.0
  %508 = vmatprep.subr.mxu0 0.0
  %509 = vmatpush1.msra.mxu0 0.0
  %510 = vmatprep.subr.mxu0 0.0
  %511 = vmatpush1.msra.mxu0 0.0
  %512 = vmatprep.subr.mxu0 0.0
  %513 = vmatpush1.msra.mxu0 0.0
  %514 = vmatprep.subr.mxu0 0.0
  %515 = vmatpush1.msra.mxu0 0.0
  %516 = vmatprep.subr.mxu0 0.0
  %517 = vmatpush1.msra.mxu0 0.0
  %518 = vmatprep.subr.mxu0 0.0
  %519 = vmatpush1.msra.mxu0 0.0
  %520 = vmatprep.subr.mxu0 0.0
  %521 = vmatpush1.msra.mxu0 0.0
  %522 = vmatprep.subr.mxu0 0.0
  %523 = vmatpush1.msra.mxu0 0.0
  %524 = vmatprep.subr.mxu0 0.0
  %525 = vmatpush1.msra.mxu0 0.0
  %526 = vmatprep.subr.mxu0 0.0
  %527 = vmatpush1.msra.mxu0 0.0
  %528 = vmatprep.subr.mxu0 0.0
  %529 = vmatpush1.msra.mxu0 0.0
  %530 = vmatprep.subr.mxu0 0.0
  %531 = vmatpush1.msra.mxu0 0.0
  %532 = vmatprep.subr.mxu0 0.0
  %533 = vmatpush1.msra.mxu0 0.0
  %534 = vmatprep.mubr.f32.mxu0 0.0
  %535 = vmatmul.mubr.f32.gmra.mrb[0].mxu0 %v258
  %v536 = vpop.f32.mrb[0].mxu0
  %v537 = vadd.f32 %v468, %v536
  %v538 = vpop.f32.mrb[0].mxu0
  %539 = vdwg.mxu0
  %v540 = vsel %vm420, %v537, -inf
  %541 = vmax.xlane.f32.xlu0 %v540
  %v542 = vpop.xlane.xlu0 %541
  %v543 = vsub.f32 %v537, %v542
  %v544 = vmul.f32 %v543, 1.442695
  %v545 = vpow.pop %v544
  %v546 = vsel %vm420, %v545, 0.0
  %547 = vadd.xlane.f32.xlu0 %v546
  %v548 = vpop.xlane.xlu0 %547
  %v549 = vrcp.pop %v548
  %v550 = vmul.f32 %v545, %v549
  %552 = vset.pattern.permute.xlu0 0
  %553 = vperm.xlu0 %552, %v550
  %v554 = vpop.permute.xlu0 %553
  %v556 = vmul.f32 %v554, %v333
  %v557 = vadd.f32 %v556, 0.0
  %558 = vset.pattern.permute.xlu0 1
  %559 = vperm.xlu0 %558, %v550
  %v560 = vpop.permute.xlu0 %559
  %v562 = vmul.f32 %v560, %v333
  %564 = vrot.lane.b32.xlu0 %v562, 96
  %v565 = vpop.permute.xlu0 %564
  %v567 = vadd.f32 %v557, %v565
  %568 = vset.pattern.permute.xlu0 2
  %569 = vperm.xlu0 %568, %v550
  %v570 = vpop.permute.xlu0 %569
  %v572 = vmul.f32 %v570, %v334
  %574 = vrot.lane.b32.xlu0 %v572, 64
  %v575 = vpop.permute.xlu0 %574
  %v577 = vadd.f32 %v567, %v575
  %v578 = vld [vmem:[%s25] sm:$0xff]
  %v579 = vld [vmem:[%s25 + $0x8] sm:$0xff]
  %v580 = vld [vmem:[%s25 + $0x10] sm:$0xff]
  %v581 = vld [vmem:[%s25 + $0x18] sm:$0xff]
  %v582 = vld [vmem:[%s27] sm:$0x1]
  %v584 = vlaneseq
  %v585 = vshrl.u32 %v584, 7
  %v586 = vsub.s32 0, %v585
  %v587 = vrot.slane %v582, %v586
  %vm589 = vcmask 261120
  %v591 = vsel %vm589, %v454, 0
  %593 = vmatprep.subr.mxu0 0.0
  %594 = vmatpush1.msra.mxu0 %v578
  %595 = vmatprep.subr.mxu0 0.0
  %596 = vmatpush1.msra.mxu0 %v579
  %597 = vmatprep.subr.mxu0 0.0
  %598 = vmatpush1.msra.mxu0 %v580
  %599 = vmatprep.subr.mxu0 0.0
  %600 = vmatpush1.msra.mxu0 %v581
  %601 = vmatprep.subr.mxu0 0.0
  %602 = vmatpush1.msra.mxu0 0.0
  %603 = vmatprep.subr.mxu0 0.0
  %604 = vmatpush1.msra.mxu0 0.0
  %605 = vmatprep.subr.mxu0 0.0
  %606 = vmatpush1.msra.mxu0 0.0
  %607 = vmatprep.subr.mxu0 0.0
  %608 = vmatpush1.msra.mxu0 0.0
  %609 = vmatprep.subr.mxu0 0.0
  %610 = vmatpush1.msra.mxu0 0.0
  %611 = vmatprep.subr.mxu0 0.0
  %612 = vmatpush1.msra.mxu0 0.0
  %613 = vmatprep.subr.mxu0 0.0
  %614 = vmatpush1.msra.mxu0 0.0
  %615 = vmatprep.subr.mxu0 0.0
  %616 = vmatpush1.msra.mxu0 0.0
  %617 = vmatprep.subr.mxu0 0.0
  %618 = vmatpush1.msra.mxu0 0.0
  %619 = vmatprep.subr.mxu0 0.0
  %620 = vmatpush1.msra.mxu0 0.0
  %621 = vmatprep.subr.mxu0 0.0
  %622 = vmatpush1.msra.mxu0 0.0
  %623 = vmatprep.subr.mxu0 0.0
  %624 = vmatpush1.msra.mxu0 0.0
  %625 = vmatprep.subr.mxu0 0.0
  %626 = vmatpush1.msra.mxu0 0.0
  %627 = vmatprep.subr.mxu0 0.0
  %628 = vmatpush1.msra.mxu0 0.0
  %629 = vmatprep.subr.mxu0 0.0
  %630 = vmatpush1.msra.mxu0 0.0
  %631 = vmatprep.subr.mxu0 0.0
  %632 = vmatpush1.msra.mxu0 0.0
  %633 = vmatprep.subr.mxu0 0.0
  %634 = vmatpush1.msra.mxu0 0.0
  %635 = vmatprep.subr.mxu0 0.0
  %636 = vmatpush1.msra.mxu0 0.0
  %637 = vmatprep.subr.mxu0 0.0
  %638 = vmatpush1.msra.mxu0 0.0
  %639 = vmatprep.subr.mxu0 0.0
  %640 = vmatpush1.msra.mxu0 0.0
  %641 = vmatprep.subr.mxu0 0.0
  %642 = vmatpush1.msra.mxu0 0.0
  %643 = vmatprep.subr.mxu0 0.0
  %644 = vmatpush1.msra.mxu0 0.0
  %645 = vmatprep.subr.mxu0 0.0
  %646 = vmatpush1.msra.mxu0 0.0
  %647 = vmatprep.subr.mxu0 0.0
  %648 = vmatpush1.msra.mxu0 0.0
  %649 = vmatprep.subr.mxu0 0.0
  %650 = vmatpush1.msra.mxu0 0.0
  %651 = vmatprep.subr.mxu0 0.0
  %652 = vmatpush1.msra.mxu0 0.0
  %653 = vmatprep.subr.mxu0 0.0
  %654 = vmatpush1.msra.mxu0 0.0
  %655 = vmatprep.subr.mxu0 0.0
  %656 = vmatpush1.msra.mxu0 0.0
  %657 = vmatprep.mubr.f32.mxu0 0.0
  %658 = vmatmul.mubr.f32.gmra.mrb[0].mxu0 %v591
  %v659 = vpop.f32.mrb[0].mxu0
  %v660 = vadd.f32 %v587, %v659
  %v661 = vpop.f32.mrb[0].mxu0
  %662 = vdwg.mxu0
  %v663 = vmul.f32 %v660, 0.999995
  %v664 = vmax.f32 %v663, 0.0
  %666 = vrot.lane.b32.xlu0 %v577, 64
  %v667 = vpop.permute.xlu0 %666
  %v668 = vsel %vm589, %v667, 0
  %670 = vmatprep.subr.mxu0 0.0
  %671 = vmatpush1.msra.mxu0 %v578
  %672 = vmatprep.subr.mxu0 0.0
  %673 = vmatpush1.msra.mxu0 %v579
  %674 = vmatprep.subr.mxu0 0.0
  %675 = vmatpush1.msra.mxu0 %v580
  %676 = vmatprep.subr.mxu0 0.0
  %677 = vmatpush1.msra.mxu0 %v581
  %678 = vmatprep.subr.mxu0 0.0
  %679 = vmatpush1.msra.mxu0 0.0
  %680 = vmatprep.subr.mxu0 0.0
  %681 = vmatpush1.msra.mxu0 0.0
  %682 = vmatprep.subr.mxu0 0.0
  %683 = vmatpush1.msra.mxu0 0.0
  %684 = vmatprep.subr.mxu0 0.0
  %685 = vmatpush1.msra.mxu0 0.0
  %686 = vmatprep.subr.mxu0 0.0
  %687 = vmatpush1.msra.mxu0 0.0
  %688 = vmatprep.subr.mxu0 0.0
  %689 = vmatpush1.msra.mxu0 0.0
  %690 = vmatprep.subr.mxu0 0.0
  %691 = vmatpush1.msra.mxu0 0.0
  %692 = vmatprep.subr.mxu0 0.0
  %693 = vmatpush1.msra.mxu0 0.0
  %694 = vmatprep.subr.mxu0 0.0
  %695 = vmatpush1.msra.mxu0 0.0
  %696 = vmatprep.subr.mxu0 0.0
  %697 = vmatpush1.msra.mxu0 0.0
  %698 = vmatprep.subr.mxu0 0.0
  %699 = vmatpush1.msra.mxu0 0.0
  %700 = vmatprep.subr.mxu0 0.0
  %701 = vmatpush1.msra.mxu0 0.0
  %702 = vmatprep.subr.mxu0 0.0
  %703 = vmatpush1.msra.mxu0 0.0
  %704 = vmatprep.subr.mxu0 0.0
  %705 = vmatpush1.msra.mxu0 0.0
  %706 = vmatprep.subr.mxu0 0.0
  %707 = vmatpush1.msra.mxu0 0.0
  %708 = vmatprep.subr.mxu0 0.0
  %709 = vmatpush1.msra.mxu0 0.0
  %710 = vmatprep.subr.mxu0 0.0
  %711 = vmatpush1.msra.mxu0 0.0
  %712 = vmatprep.subr.mxu0 0.0
  %713 = vmatpush1.msra.mxu0 0.0
  %714 = vmatprep.subr.mxu0 0.0
  %715 = vmatpush1.msra.mxu0 0.0
  %716 = vmatprep.subr.mxu0 0.0
  %717 = vmatpush1.msra.mxu0 0.0
  %718 = vmatprep.subr.mxu0 0.0
  %719 = vmatpush1.msra.mxu0 0.0
  %720 = vmatprep.subr.mxu0 0.0
  %721 = vmatpush1.msra.mxu0 0.0
  %722 = vmatprep.subr.mxu0 0.0
  %723 = vmatpush1.msra.mxu0 0.0
  %724 = vmatprep.subr.mxu0 0.0
  %725 = vmatpush1.msra.mxu0 0.0
  %726 = vmatprep.subr.mxu0 0.0
  %727 = vmatpush1.msra.mxu0 0.0
  %728 = vmatprep.subr.mxu0 0.0
  %729 = vmatpush1.msra.mxu0 0.0
  %730 = vmatprep.subr.mxu0 0.0
  %731 = vmatpush1.msra.mxu0 0.0
  %732 = vmatprep.subr.mxu0 0.0
  %733 = vmatpush1.msra.mxu0 0.0
  %734 = vmatprep.mubr.f32.mxu0 0.0
  %735 = vmatmul.mubr.f32.gmra.mrb[0].mxu0 %v668
  %v736 = vpop.f32.mrb[0].mxu0
  %v737 = vadd.f32 %v587, %v736
  %v738 = vpop.f32.mrb[0].mxu0
  %739 = vdwg.mxu0
  %v740 = vmul.f32 %v737, 0.999995
  %v741 = vmax.f32 %v740, 0.0
  %v742 = vld [vmem:[%s29] sm:$0xff]
  %v743 = vld [vmem:[%s29 + $0x8] sm:$0xff]
  %v744 = vld [vmem:[%s29 + $0x10] sm:$0xff]
  %v745 = vld [vmem:[%s29 + $0x18] sm:$0xff]
  %v746 = vld [vmem:[%s31] sm:$0x1]
  %v748 = vlaneseq
  %v749 = vshrl.u32 %v748, 7
  %v750 = vsub.s32 0, %v749
  %v751 = vrot.slane %v746, %v750
  %753 = vmatprep.subr.mxu0 0.0
  %754 = vmatpush1.msra.mxu0 %v742
  %755 = vmatprep.subr.mxu0 0.0
  %756 = vmatpush1.msra.mxu0 %v743
  %757 = vmatprep.subr.mxu0 0.0
  %758 = vmatpush1.msra.mxu0 %v744
  %759 = vmatprep.subr.mxu0 0.0
  %760 = vmatpush1.msra.mxu0 %v745
  %761 = vmatprep.subr.mxu0 0.0
  %762 = vmatpush1.msra.mxu0 0.0
  %763 = vmatprep.subr.mxu0 0.0
  %764 = vmatpush1.msra.mxu0 0.0
  %765 = vmatprep.subr.mxu0 0.0
  %766 = vmatpush1.msra.mxu0 0.0
  %767 = vmatprep.subr.mxu0 0.0
  %768 = vmatpush1.msra.mxu0 0.0
  %769 = vmatprep.subr.mxu0 0.0
  %770 = vmatpush1.msra.mxu0 0.0
  %771 = vmatprep.subr.mxu0 0.0
  %772 = vmatpush1.msra.mxu0 0.0
  %773 = vmatprep.subr.mxu0 0.0
  %774 = vmatpush1.msra.mxu0 0.0
  %775 = vmatprep.subr.mxu0 0.0
  %776 = vmatpush1.msra.mxu0 0.0
  %777 = vmatprep.subr.mxu0 0.0
  %778 = vmatpush1.msra.mxu0 0.0
  %779 = vmatprep.subr.mxu0 0.0
  %780 = vmatpush1.msra.mxu0 0.0
  %781 = vmatprep.subr.mxu0 0.0
  %782 = vmatpush1.msra.mxu0 0.0
  %783 = vmatprep.subr.mxu0 0.0
  %784 = vmatpush1.msra.mxu0 0.0
  %785 = vmatprep.subr.mxu0 0.0
  %786 = vmatpush1.msra.mxu0 0.0
  %787 = vmatprep.subr.mxu0 0.0
  %788 = vmatpush1.msra.mxu0 0.0
  %789 = vmatprep.subr.mxu0 0.0
  %790 = vmatpush1.msra.mxu0 0.0
  %791 = vmatprep.subr.mxu0 0.0
  %792 = vmatpush1.msra.mxu0 0.0
  %793 = vmatprep.subr.mxu0 0.0
  %794 = vmatpush1.msra.mxu0 0.0
  %795 = vmatprep.subr.mxu0 0.0
  %796 = vmatpush1.msra.mxu0 0.0
  %797 = vmatprep.subr.mxu0 0.0
  %798 = vmatpush1.msra.mxu0 0.0
  %799 = vmatprep.subr.mxu0 0.0
  %800 = vmatpush1.msra.mxu0 0.0
  %801 = vmatprep.subr.mxu0 0.0
  %802 = vmatpush1.msra.mxu0 0.0
  %803 = vmatprep.subr.mxu0 0.0
  %804 = vmatpush1.msra.mxu0 0.0
  %805 = vmatprep.subr.mxu0 0.0
  %806 = vmatpush1.msra.mxu0 0.0
  %807 = vmatprep.subr.mxu0 0.0
  %808 = vmatpush1.msra.mxu0 0.0
  %809 = vmatprep.subr.mxu0 0.0
  %810 = vmatpush1.msra.mxu0 0.0
  %811 = vmatprep.subr.mxu0 0.0
  %812 = vmatpush1.msra.mxu0 0.0
  %813 = vmatprep.subr.mxu0 0.0
  %814 = vmatpush1.msra.mxu0 0.0
  %815 = vmatprep.subr.mxu0 0.0
  %816 = vmatpush1.msra.mxu0 0.0
  %817 = vmatprep.mubr.f32.mxu0 0.0
  %818 = vmatmul.mubr.f32.gmra.mrb[0].mxu0 %v591
  %v819 = vpop.f32.mrb[0].mxu0
  %v820 = vadd.f32 %v751, %v819
  %v821 = vpop.f32.mrb[0].mxu0
  %822 = vdwg.mxu0
  %v823 = vsel %vm420, %v820, -inf
  %824 = vmax.xlane.f32.xlu0 %v823
  %v825 = vpop.xlane.xlu0 %824
  %v826 = vsub.f32 %v820, %v825
  %v827 = vmul.f32 %v826, 1.442695
  %v828 = vpow.pop %v827
  %v829 = vsel %vm420, %v828, 0.0
  %830 = vadd.xlane.f32.xlu0 %v829
  %v831 = vpop.xlane.xlu0 %830
  %v832 = vrcp.pop %v831
  %v833 = vmul.f32 %v828, %v832
  %835 = vset.pattern.permute.xlu0 0
  %836 = vperm.xlu0 %835, %v833
  %v837 = vpop.permute.xlu0 %836
  %v839 = vmul.f32 %v837, %v664
  %v840 = vadd.f32 %v839, 0.0
  %841 = vset.pattern.permute.xlu0 1
  %842 = vperm.xlu0 %841, %v833
  %v843 = vpop.permute.xlu0 %842
  %v845 = vmul.f32 %v843, %v664
  %847 = vrot.lane.b32.xlu0 %v845, 112
  %v848 = vpop.permute.xlu0 %847
  %v850 = vadd.f32 %v840, %v848
  %851 = vset.pattern.permute.xlu0 2
  %852 = vperm.xlu0 %851, %v833
  %v853 = vpop.permute.xlu0 %852
  %v855 = vmul.f32 %v853, %v664
  %857 = vrot.lane.b32.xlu0 %v855, 64
  %v858 = vpop.permute.xlu0 %857
  %v860 = vadd.f32 %v850, %v858
  %v861 = vld [vmem:[%s33] sm:$0xff]
  %v862 = vld [vmem:[%s33 + $0x8] sm:$0xff]
  %v863 = vld [vmem:[%s33 + $0x10] sm:$0xff]
  %v864 = vld [vmem:[%s33 + $0x18] sm:$0xff]
  %v865 = vld [vmem:[%s35] sm:$0x1]
  %v867 = vlaneseq
  %v868 = vshrl.u32 %v867, 7
  %v869 = vsub.s32 0, %v868
  %v870 = vrot.slane %v865, %v869
  %872 = vmatprep.subr.mxu0 0.0
  %873 = vmatpush1.msra.mxu0 %v861
  %874 = vmatprep.subr.mxu0 0.0
  %875 = vmatpush1.msra.mxu0 %v862
  %876 = vmatprep.subr.mxu0 0.0
  %877 = vmatpush1.msra.mxu0 %v863
  %878 = vmatprep.subr.mxu0 0.0
  %879 = vmatpush1.msra.mxu0 %v864
  %880 = vmatprep.subr.mxu0 0.0
  %881 = vmatpush1.msra.mxu0 0.0
  %882 = vmatprep.subr.mxu0 0.0
  %883 = vmatpush1.msra.mxu0 0.0
  %884 = vmatprep.subr.mxu0 0.0
  %885 = vmatpush1.msra.mxu0 0.0
  %886 = vmatprep.subr.mxu0 0.0
  %887 = vmatpush1.msra.mxu0 0.0
  %888 = vmatprep.subr.mxu0 0.0
  %889 = vmatpush1.msra.mxu0 0.0
  %890 = vmatprep.subr.mxu0 0.0
  %891 = vmatpush1.msra.mxu0 0.0
  %892 = vmatprep.subr.mxu0 0.0
  %893 = vmatpush1.msra.mxu0 0.0
  %894 = vmatprep.subr.mxu0 0.0
  %895 = vmatpush1.msra.mxu0 0.0
  %896 = vmatprep.subr.mxu0 0.0
  %897 = vmatpush1.msra.mxu0 0.0
  %898 = vmatprep.subr.mxu0 0.0
  %899 = vmatpush1.msra.mxu0 0.0
  %900 = vmatprep.subr.mxu0 0.0
  %901 = vmatpush1.msra.mxu0 0.0
  %902 = vmatprep.subr.mxu0 0.0
  %903 = vmatpush1.msra.mxu0 0.0
  %904 = vmatprep.subr.mxu0 0.0
  %905 = vmatpush1.msra.mxu0 0.0
  %906 = vmatprep.subr.mxu0 0.0
  %907 = vmatpush1.msra.mxu0 0.0
  %908 = vmatprep.subr.mxu0 0.0
  %909 = vmatpush1.msra.mxu0 0.0
  %910 = vmatprep.subr.mxu0 0.0
  %911 = vmatpush1.msra.mxu0 0.0
  %912 = vmatprep.subr.mxu0 0.0
  %913 = vmatpush1.msra.mxu0 0.0
  %914 = vmatprep.subr.mxu0 0.0
  %915 = vmatpush1.msra.mxu0 0.0
  %916 = vmatprep.subr.mxu0 0.0
  %917 = vmatpush1.msra.mxu0 0.0
  %918 = vmatprep.subr.mxu0 0.0
  %919 = vmatpush1.msra.mxu0 0.0
  %920 = vmatprep.subr.mxu0 0.0
  %921 = vmatpush1.msra.mxu0 0.0
  %922 = vmatprep.subr.mxu0 0.0
  %923 = vmatpush1.msra.mxu0 0.0
  %924 = vmatprep.subr.mxu0 0.0
  %925 = vmatpush1.msra.mxu0 0.0
  %926 = vmatprep.subr.mxu0 0.0
  %927 = vmatpush1.msra.mxu0 0.0
  %928 = vmatprep.subr.mxu0 0.0
  %929 = vmatpush1.msra.mxu0 0.0
  %930 = vmatprep.subr.mxu0 0.0
  %931 = vmatpush1.msra.mxu0 0.0
  %932 = vmatprep.subr.mxu0 0.0
  %933 = vmatpush1.msra.mxu0 0.0
  %934 = vmatprep.subr.mxu0 0.0
  %935 = vmatpush1.msra.mxu0 0.0
  %936 = vmatprep.mubr.f32.mxu0 0.0
  %937 = vmatmul.mubr.f32.gmra.mrb[0].mxu0 %v668
  %v938 = vpop.f32.mrb[0].mxu0
  %v939 = vadd.f32 %v870, %v938
  %v940 = vpop.f32.mrb[0].mxu0
  %941 = vdwg.mxu0
  %v942 = vsel %vm420, %v939, -inf
  %943 = vmax.xlane.f32.xlu0 %v942
  %v944 = vpop.xlane.xlu0 %943
  %v945 = vsub.f32 %v939, %v944
  %v946 = vmul.f32 %v945, 1.442695
  %v947 = vpow.pop %v946
  %v948 = vsel %vm420, %v947, 0.0
  %949 = vadd.xlane.f32.xlu0 %v948
  %v950 = vpop.xlane.xlu0 %949
  %v951 = vrcp.pop %v950
  %v952 = vmul.f32 %v947, %v951
  %954 = vset.pattern.permute.xlu0 0
  %955 = vperm.xlu0 %954, %v952
  %v956 = vpop.permute.xlu0 %955
  %v958 = vmul.f32 %v956, %v741
  %v959 = vadd.f32 %v958, 0.0
  %960 = vset.pattern.permute.xlu0 1
  %961 = vperm.xlu0 %960, %v952
  %v962 = vpop.permute.xlu0 %961
  %v964 = vmul.f32 %v962, %v741
  %966 = vrot.lane.b32.xlu0 %v964, 112
  %v967 = vpop.permute.xlu0 %966
  %v969 = vadd.f32 %v959, %v967
  %970 = vset.pattern.permute.xlu0 2
  %971 = vperm.xlu0 %970, %v952
  %v972 = vpop.permute.xlu0 %971
  %v974 = vmul.f32 %v972, %v741
  %976 = vrot.lane.b32.xlu0 %v974, 96
  %v977 = vpop.permute.xlu0 %976
  %v979 = vadd.f32 %v969, %v977
  %v980 = vlaneseq
  %v981 = vand.u32 %v980, 127
  %v982 = vld [vmem:[%s41] sm:$0xff]
  %v983 = vld [vmem:[%s41 + $0x8] sm:$0xff]
  %v984 = vld [vmem:[%s43] sm:$0x1]
  %v986 = vlaneseq
  %v987 = vshrl.u32 %v986, 7
  %v988 = vsub.s32 0, %v987
  %v989 = vrot.slane %v984, %v988
  %vm991 = vcmask 130048
  %v993 = vsel %vm991, %v860, 0
  %995 = vmatprep.subr.mxu0 0.0
  %996 = vmatpush1.msra.mxu0 %v982
  %997 = vmatprep.subr.mxu0 0.0
  %998 = vmatpush1.msra.mxu0 %v983
  %999 = vmatprep.subr.mxu0 0.0
  %1000 = vmatpush1.msra.mxu0 0.0
  %1001 = vmatprep.subr.mxu0 0.0
  %1002 = vmatpush1.msra.mxu0 0.0
  %1003 = vmatprep.subr.mxu0 0.0
  %1004 = vmatpush1.msra.mxu0 0.0
  %1005 = vmatprep.subr.mxu0 0.0
  %1006 = vmatpush1.msra.mxu0 0.0
  %1007 = vmatprep.subr.mxu0 0.0
  %1008 = vmatpush1.msra.mxu0 0.0
  %1009 = vmatprep.subr.mxu0 0.0
  %1010 = vmatpush1.msra.mxu0 0.0
  %1011 = vmatprep.subr.mxu0 0.0
  %1012 = vmatpush1.msra.mxu0 0.0
  %1013 = vmatprep.subr.mxu0 0.0
  %1014 = vmatpush1.msra.mxu0 0.0
  %1015 = vmatprep.subr.mxu0 0.0
  %1016 = vmatpush1.msra.mxu0 0.0
  %1017 = vmatprep.subr.mxu0 0.0
  %1018 = vmatpush1.msra.mxu0 0.0
  %1019 = vmatprep.subr.mxu0 0.0
  %1020 = vmatpush1.msra.mxu0 0.0
  %1021 = vmatprep.subr.mxu0 0.0
  %1022 = vmatpush1.msra.mxu0 0.0
  %1023 = vmatprep.subr.mxu0 0.0
  %1024 = vmatpush1.msra.mxu0 0.0
  %1025 = vmatprep.subr.mxu0 0.0
  %1026 = vmatpush1.msra.mxu0 0.0
  %1027 = vmatprep.subr.mxu0 0.0
  %1028 = vmatpush1.msra.mxu0 0.0
  %1029 = vmatprep.subr.mxu0 0.0
  %1030 = vmatpush1.msra.mxu0 0.0
  %1031 = vmatprep.subr.mxu0 0.0
  %1032 = vmatpush1.msra.mxu0 0.0
  %1033 = vmatprep.subr.mxu0 0.0
  %1034 = vmatpush1.msra.mxu0 0.0
  %1035 = vmatprep.subr.mxu0 0.0
  %1036 = vmatpush1.msra.mxu0 0.0
  %1037 = vmatprep.subr.mxu0 0.0
  %1038 = vmatpush1.msra.mxu0 0.0
  %1039 = vmatprep.subr.mxu0 0.0
  %1040 = vmatpush1.msra.mxu0 0.0
  %1041 = vmatprep.subr.mxu0 0.0
  %1042 = vmatpush1.msra.mxu0 0.0
  %1043 = vmatprep.subr.mxu0 0.0
  %1044 = vmatpush1.msra.mxu0 0.0
  %1045 = vmatprep.subr.mxu0 0.0
  %1046 = vmatpush1.msra.mxu0 0.0
  %1047 = vmatprep.subr.mxu0 0.0
  %1048 = vmatpush1.msra.mxu0 0.0
  %1049 = vmatprep.subr.mxu0 0.0
  %1050 = vmatpush1.msra.mxu0 0.0
  %1051 = vmatprep.subr.mxu0 0.0
  %1052 = vmatpush1.msra.mxu0 0.0
  %1053 = vmatprep.subr.mxu0 0.0
  %1054 = vmatpush1.msra.mxu0 0.0
  %1055 = vmatprep.subr.mxu0 0.0
  %1056 = vmatpush1.msra.mxu0 0.0
  %1057 = vmatprep.subr.mxu0 0.0
  %1058 = vmatpush1.msra.mxu0 0.0
  %1059 = vmatprep.mubr.f32.mxu0 0.0
  %1060 = vmatmul.mubr.f32.gmra.mrb[0].mxu0 %v993
  %v1061 = vpop.f32.mrb[0].mxu0
  %v1062 = vadd.f32 %v989, %v1061
  %v1063 = vpop.f32.mrb[0].mxu0
  %1064 = vdwg.mxu0
  %v1065 = vmul.f32 %v1062, 0.999995
  %v1066 = vmax.f32 %v1065, 0.0
  %v1067 = vld [vmem:[%s45] sm:$0xff]
  %v1068 = vld [vmem:[%s45 + $0x8] sm:$0xff]
  %v1069 = vld [vmem:[%s47] sm:$0x1]
  %v1071 = vlaneseq
  %v1072 = vshrl.u32 %v1071, 7
  %v1073 = vsub.s32 0, %v1072
  %v1074 = vrot.slane %v1069, %v1073
  %v1077 = vsel %vm991, %v1066, 0
  %1079 = vmatprep.subr.mxu0 0.0
  %1080 = vmatpush1.msra.mxu0 %v1067
  %1081 = vmatprep.subr.mxu0 0.0
  %1082 = vmatpush1.msra.mxu0 %v1068
  %1083 = vmatprep.subr.mxu0 0.0
  %1084 = vmatpush1.msra.mxu0 0.0
  %1085 = vmatprep.subr.mxu0 0.0
  %1086 = vmatpush1.msra.mxu0 0.0
  %1087 = vmatprep.subr.mxu0 0.0
  %1088 = vmatpush1.msra.mxu0 0.0
  %1089 = vmatprep.subr.mxu0 0.0
  %1090 = vmatpush1.msra.mxu0 0.0
  %1091 = vmatprep.subr.mxu0 0.0
  %1092 = vmatpush1.msra.mxu0 0.0
  %1093 = vmatprep.subr.mxu0 0.0
  %1094 = vmatpush1.msra.mxu0 0.0
  %1095 = vmatprep.subr.mxu0 0.0
  %1096 = vmatpush1.msra.mxu0 0.0
  %1097 = vmatprep.subr.mxu0 0.0
  %1098 = vmatpush1.msra.mxu0 0.0
  %1099 = vmatprep.subr.mxu0 0.0
  %1100 = vmatpush1.msra.mxu0 0.0
  %1101 = vmatprep.subr.mxu0 0.0
  %1102 = vmatpush1.msra.mxu0 0.0
  %1103 = vmatprep.subr.mxu0 0.0
  %1104 = vmatpush1.msra.mxu0 0.0
  %1105 = vmatprep.subr.mxu0 0.0
  %1106 = vmatpush1.msra.mxu0 0.0
  %1107 = vmatprep.subr.mxu0 0.0
  %1108 = vmatpush1.msra.mxu0 0.0
  %1109 = vmatprep.subr.mxu0 0.0
  %1110 = vmatpush1.msra.mxu0 0.0
  %1111 = vmatprep.subr.mxu0 0.0
  %1112 = vmatpush1.msra.mxu0 0.0
  %1113 = vmatprep.subr.mxu0 0.0
  %1114 = vmatpush1.msra.mxu0 0.0
  %1115 = vmatprep.subr.mxu0 0.0
  %1116 = vmatpush1.msra.mxu0 0.0
  %1117 = vmatprep.subr.mxu0 0.0
  %1118 = vmatpush1.msra.mxu0 0.0
  %1119 = vmatprep.subr.mxu0 0.0
  %1120 = vmatpush1.msra.mxu0 0.0
  %1121 = vmatprep.subr.mxu0 0.0
  %1122 = vmatpush1.msra.mxu0 0.0
  %1123 = vmatprep.subr.mxu0 0.0
  %1124 = vmatpush1.msra.mxu0 0.0
  %1125 = vmatprep.subr.mxu0 0.0
  %1126 = vmatpush1.msra.mxu0 0.0
  %1127 = vmatprep.subr.mxu0 0.0
  %1128 = vmatpush1.msra.mxu0 0.0
  %1129 = vmatprep.subr.mxu0 0.0
  %1130 = vmatpush1.msra.mxu0 0.0
  %1131 = vmatprep.subr.mxu0 0.0
  %1132 = vmatpush1.msra.mxu0 0.0
  %1133 = vmatprep.subr.mxu0 0.0
  %1134 = vmatpush1.msra.mxu0 0.0
  %1135 = vmatprep.subr.mxu0 0.0
  %1136 = vmatpush1.msra.mxu0 0.0
  %1137 = vmatprep.subr.mxu0 0.0
  %1138 = vmatpush1.msra.mxu0 0.0
  %1139 = vmatprep.subr.mxu0 0.0
  %1140 = vmatpush1.msra.mxu0 0.0
  %1141 = vmatprep.subr.mxu0 0.0
  %1142 = vmatpush1.msra.mxu0 0.0
  %1143 = vmatprep.mubr.f32.mxu0 0.0
  %1144 = vmatmul.mubr.f32.gmra.mrb[0].mxu0 %v1077
  %v1145 = vpop.f32.mrb[0].mxu0
  %v1146 = vadd.f32 %v1074, %v1145
  %v1147 = vpop.f32.mrb[0].mxu0
  %1148 = vdwg.mxu0
  %v1149 = vmul.f32 %v1146, 0.999995
  %v1150 = vmax.f32 %v1149, 0.0
  %v1151 = vld [vmem:[%s49] sm:$0xff]
  %v1152 = vld [vmem:[#allocation2] sm:$0x1]
  %v1154 = vlaneseq
  %v1155 = vshrl.u32 %v1154, 7
  %v1156 = vsub.s32 0, %v1155
  %v1157 = vrot.slane %v1152, %v1156
  %vm1159 = vcmask 64512
  %v1161 = vsel %vm1159, %v1150, 0
  %1163 = vmatprep.subr.mxu0 0.0
  %1164 = vmatpush1.msra.mxu0 %v1151
  %1165 = vmatprep.subr.mxu0 0.0
  %1166 = vmatpush1.msra.mxu0 0.0
  %1167 = vmatprep.subr.mxu0 0.0
  %1168 = vmatpush1.msra.mxu0 0.0
  %1169 = vmatprep.subr.mxu0 0.0
  %1170 = vmatpush1.msra.mxu0 0.0
  %1171 = vmatprep.subr.mxu0 0.0
  %1172 = vmatpush1.msra.mxu0 0.0
  %1173 = vmatprep.subr.mxu0 0.0
  %1174 = vmatpush1.msra.mxu0 0.0
  %1175 = vmatprep.subr.mxu0 0.0
  %1176 = vmatpush1.msra.mxu0 0.0
  %1177 = vmatprep.subr.mxu0 0.0
  %1178 = vmatpush1.msra.mxu0 0.0
  %1179 = vmatprep.subr.mxu0 0.0
  %1180 = vmatpush1.msra.mxu0 0.0
  %1181 = vmatprep.subr.mxu0 0.0
  %1182 = vmatpush1.msra.mxu0 0.0
  %1183 = vmatprep.subr.mxu0 0.0
  %1184 = vmatpush1.msra.mxu0 0.0
  %1185 = vmatprep.subr.mxu0 0.0
  %1186 = vmatpush1.msra.mxu0 0.0
  %1187 = vmatprep.subr.mxu0 0.0
  %1188 = vmatpush1.msra.mxu0 0.0
  %1189 = vmatprep.subr.mxu0 0.0
  %1190 = vmatpush1.msra.mxu0 0.0
  %1191 = vmatprep.subr.mxu0 0.0
  %1192 = vmatpush1.msra.mxu0 0.0
  %1193 = vmatprep.subr.mxu0 0.0
  %1194 = vmatpush1.msra.mxu0 0.0
  %1195 = vmatprep.subr.mxu0 0.0
  %1196 = vmatpush1.msra.mxu0 0.0
  %1197 = vmatprep.subr.mxu0 0.0
  %1198 = vmatpush1.msra.mxu0 0.0
  %1199 = vmatprep.subr.mxu0 0.0
  %1200 = vmatpush1.msra.mxu0 0.0
  %1201 = vmatprep.subr.mxu0 0.0
  %1202 = vmatpush1.msra.mxu0 0.0
  %1203 = vmatprep.subr.mxu0 0.0
  %1204 = vmatpush1.msra.mxu0 0.0
  %1205 = vmatprep.subr.mxu0 0.0
  %1206 = vmatpush1.msra.mxu0 0.0
  %1207 = vmatprep.subr.mxu0 0.0
  %1208 = vmatpush1.msra.mxu0 0.0
  %1209 = vmatprep.subr.mxu0 0.0
  %1210 = vmatpush1.msra.mxu0 0.0
  %1211 = vmatprep.subr.mxu0 0.0
  %1212 = vmatpush1.msra.mxu0 0.0
  %1213 = vmatprep.subr.mxu0 0.0
  %1214 = vmatpush1.msra.mxu0 0.0
  %1215 = vmatprep.subr.mxu0 0.0
  %1216 = vmatpush1.msra.mxu0 0.0
  %1217 = vmatprep.subr.mxu0 0.0
  %1218 = vmatpush1.msra.mxu0 0.0
  %1219 = vmatprep.subr.mxu0 0.0
  %1220 = vmatpush1.msra.mxu0 0.0
  %1221 = vmatprep.subr.mxu0 0.0
  %1222 = vmatpush1.msra.mxu0 0.0
  %1223 = vmatprep.subr.mxu0 0.0
  %1224 = vmatpush1.msra.mxu0 0.0
  %1225 = vmatprep.subr.mxu0 0.0
  %1226 = vmatpush1.msra.mxu0 0.0
  %1227 = vmatprep.mubr.f32.mxu0 0.0
  %1228 = vmatmul.mubr.f32.gmra.mrb[0].mxu0 %v1161
  %v1229 = vpop.f32.mrb[0].mxu0
  %v1230 = vadd.f32 %v1157, %v1229
  %v1231 = vpop.f32.mrb[0].mxu0
  %1232 = vdwg.mxu0
  %v1233 = vxor.u32 %v1230, 2147483648
  %v1234 = vmul.f32 %v1233, 1.442695
  %v1235 = vpow.pop %v1234
  %v1236 = vadd.f32 %v1235, 1.0
  %v1237 = vrcp.pop %v1236
  %v1238 = vmul.f32 1.0, %v1237
  %vm1239 = vcmp.eq.s32.totalorder %v981, 0
  %1241 = vset.pattern.permute.xlu0 0
  %1242 = vperm.xlu0 %1241, %v1238
  %v1243 = vpop.permute.xlu0 %1242
  %v1245 = vsel %vm1239, %v1243, 0.0
  %v1246 = vadd.f32 %v1245, 0.0
  %v1247 = vld [vmem:[%s53] sm:$0xff]
  %v1248 = vld [vmem:[%s53 + $0x8] sm:$0xff]
  %v1249 = vld [vmem:[%s55] sm:$0x1]
  %v1251 = vlaneseq
  %v1252 = vshrl.u32 %v1251, 7
  %v1253 = vsub.s32 0, %v1252
  %v1254 = vrot.slane %v1249, %v1253
  %1257 = vrot.lane.b32.xlu0 %v979, 96
  %v1258 = vpop.permute.xlu0 %1257
  %v1259 = vsel %vm991, %v1258, 0
  %1261 = vmatprep.subr.mxu0 0.0
  %1262 = vmatpush1.msra.mxu0 %v1247
  %1263 = vmatprep.subr.mxu0 0.0
  %1264 = vmatpush1.msra.mxu0 %v1248
  %1265 = vmatprep.subr.mxu0 0.0
  %1266 = vmatpush1.msra.mxu0 0.0
  %1267 = vmatprep.subr.mxu0 0.0
  %1268 = vmatpush1.msra.mxu0 0.0
  %1269 = vmatprep.subr.mxu0 0.0
  %1270 = vmatpush1.msra.mxu0 0.0
  %1271 = vmatprep.subr.mxu0 0.0
  %1272 = vmatpush1.msra.mxu0 0.0
  %1273 = vmatprep.subr.mxu0 0.0
  %1274 = vmatpush1.msra.mxu0 0.0
  %1275 = vmatprep.subr.mxu0 0.0
  %1276 = vmatpush1.msra.mxu0 0.0
  %1277 = vmatprep.subr.mxu0 0.0
  %1278 = vmatpush1.msra.mxu0 0.0
  %1279 = vmatprep.subr.mxu0 0.0
  %1280 = vmatpush1.msra.mxu0 0.0
  %1281 = vmatprep.subr.mxu0 0.0
  %1282 = vmatpush1.msra.mxu0 0.0
  %1283 = vmatprep.subr.mxu0 0.0
  %1284 = vmatpush1.msra.mxu0 0.0
  %1285 = vmatprep.subr.mxu0 0.0
  %1286 = vmatpush1.msra.mxu0 0.0
  %1287 = vmatprep.subr.mxu0 0.0
  %1288 = vmatpush1.msra.mxu0 0.0
  %1289 = vmatprep.subr.mxu0 0.0
  %1290 = vmatpush1.msra.mxu0 0.0
  %1291 = vmatprep.subr.mxu0 0.0
  %1292 = vmatpush1.msra.mxu0 0.0
  %1293 = vmatprep.subr.mxu0 0.0
  %1294 = vmatpush1.msra.mxu0 0.0
  %1295 = vmatprep.subr.mxu0 0.0
  %1296 = vmatpush1.msra.mxu0 0.0
  %1297 = vmatprep.subr.mxu0 0.0
  %1298 = vmatpush1.msra.mxu0 0.0
  %1299 = vmatprep.subr.mxu0 0.0
  %1300 = vmatpush1.msra.mxu0 0.0
  %1301 = vmatprep.subr.mxu0 0.0
  %1302 = vmatpush1.msra.mxu0 0.0
  %1303 = vmatprep.subr.mxu0 0.0
  %1304 = vmatpush1.msra.mxu0 0.0
  %1305 = vmatprep.subr.mxu0 0.0
  %1306 = vmatpush1.msra.mxu0 0.0
  %1307 = vmatprep.subr.mxu0 0.0
  %1308 = vmatpush1.msra.mxu0 0.0
  %1309 = vmatprep.subr.mxu0 0.0
  %1310 = vmatpush1.msra.mxu0 0.0
  %1311 = vmatprep.subr.mxu0 0.0
  %1312 = vmatpush1.msra.mxu0 0.0
  %1313 = vmatprep.subr.mxu0 0.0
  %1314 = vmatpush1.msra.mxu0 0.0
  %1315 = vmatprep.subr.mxu0 0.0
  %1316 = vmatpush1.msra.mxu0 0.0
  %1317 = vmatprep.subr.mxu0 0.0
  %1318 = vmatpush1.msra.mxu0 0.0
  %1319 = vmatprep.subr.mxu0 0.0
  %1320 = vmatpush1.msra.mxu0 0.0
  %1321 = vmatprep.subr.mxu0 0.0
  %1322 = vmatpush1.msra.mxu0 0.0
  %1323 = vmatprep.subr.mxu0 0.0
  %1324 = vmatpush1.msra.mxu0 0.0
  %1325 = vmatprep.mubr.f32.mxu0 0.0
  %1326 = vmatmul.mubr.f32.gmra.mrb[0].mxu0 %v1259
  %v1327 = vpop.f32.mrb[0].mxu0
  %v1328 = vadd.f32 %v1254, %v1327
  %v1329 = vpop.f32.mrb[0].mxu0
  %1330 = vdwg.mxu0
  %v1331 = vmul.f32 %v1328, 0.999995
  %v1332 = vmax.f32 %v1331, 0.0
  %v1333 = vld [vmem:[%s57] sm:$0xff]
  %v1334 = vld [vmem:[%s57 + $0x8] sm:$0xff]
  %v1335 = vld [vmem:[%s59] sm:$0x1]
  %v1337 = vlaneseq
  %v1338 = vshrl.u32 %v1337, 7
  %v1339 = vsub.s32 0, %v1338
  %v1340 = vrot.slane %v1335, %v1339
  %v1343 = vsel %vm991, %v1332, 0
  %1345 = vmatprep.subr.mxu0 0.0
  %1346 = vmatpush1.msra.mxu0 %v1333
  %1347 = vmatprep.subr.mxu0 0.0
  %1348 = vmatpush1.msra.mxu0 %v1334
  %1349 = vmatprep.subr.mxu0 0.0
  %1350 = vmatpush1.msra.mxu0 0.0
  %1351 = vmatprep.subr.mxu0 0.0
  %1352 = vmatpush1.msra.mxu0 0.0
  %1353 = vmatprep.subr.mxu0 0.0
  %1354 = vmatpush1.msra.mxu0 0.0
  %1355 = vmatprep.subr.mxu0 0.0
  %1356 = vmatpush1.msra.mxu0 0.0
  %1357 = vmatprep.subr.mxu0 0.0
  %1358 = vmatpush1.msra.mxu0 0.0
  %1359 = vmatprep.subr.mxu0 0.0
  %1360 = vmatpush1.msra.mxu0 0.0
  %1361 = vmatprep.subr.mxu0 0.0
  %1362 = vmatpush1.msra.mxu0 0.0
  %1363 = vmatprep.subr.mxu0 0.0
  %1364 = vmatpush1.msra.mxu0 0.0
  %1365 = vmatprep.subr.mxu0 0.0
  %1366 = vmatpush1.msra.mxu0 0.0
  %1367 = vmatprep.subr.mxu0 0.0
  %1368 = vmatpush1.msra.mxu0 0.0
  %1369 = vmatprep.subr.mxu0 0.0
  %1370 = vmatpush1.msra.mxu0 0.0
  %1371 = vmatprep.subr.mxu0 0.0
  %1372 = vmatpush1.msra.mxu0 0.0
  %1373 = vmatprep.subr.mxu0 0.0
  %1374 = vmatpush1.msra.mxu0 0.0
  %1375 = vmatprep.subr.mxu0 0.0
  %1376 = vmatpush1.msra.mxu0 0.0
  %1377 = vmatprep.subr.mxu0 0.0
  %1378 = vmatpush1.msra.mxu0 0.0
  %1379 = vmatprep.subr.mxu0 0.0
  %1380 = vmatpush1.msra.mxu0 0.0
  %1381 = vmatprep.subr.mxu0 0.0
  %1382 = vmatpush1.msra.mxu0 0.0
  %1383 = vmatprep.subr.mxu0 0.0
  %1384 = vmatpush1.msra.mxu0 0.0
  %1385 = vmatprep.subr.mxu0 0.0
  %1386 = vmatpush1.msra.mxu0 0.0
  %1387 = vmatprep.subr.mxu0 0.0
  %1388 = vmatpush1.msra.mxu0 0.0
  %1389 = vmatprep.subr.mxu0 0.0
  %1390 = vmatpush1.msra.mxu0 0.0
  %1391 = vmatprep.subr.mxu0 0.0
  %1392 = vmatpush1.msra.mxu0 0.0
  %1393 = vmatprep.subr.mxu0 0.0
  %1394 = vmatpush1.msra.mxu0 0.0
  %1395 = vmatprep.subr.mxu0 0.0
  %1396 = vmatpush1.msra.mxu0 0.0
  %1397 = vmatprep.subr.mxu0 0.0
  %1398 = vmatpush1.msra.mxu0 0.0
  %1399 = vmatprep.subr.mxu0 0.0
  %1400 = vmatpush1.msra.mxu0 0.0
  %1401 = vmatprep.subr.mxu0 0.0
  %1402 = vmatpush1.msra.mxu0 0.0
  %1403 = vmatprep.subr.mxu0 0.0
  %1404 = vmatpush1.msra.mxu0 0.0
  %1405 = vmatprep.subr.mxu0 0.0
  %1406 = vmatpush1.msra.mxu0 0.0
  %1407 = vmatprep.subr.mxu0 0.0
  %1408 = vmatpush1.msra.mxu0 0.0
  %1409 = vmatprep.mubr.f32.mxu0 0.0
  %1410 = vmatmul.mubr.f32.gmra.mrb[0].mxu0 %v1343
  %v1411 = vpop.f32.mrb[0].mxu0
  %v1412 = vadd.f32 %v1340, %v1411
  %v1413 = vpop.f32.mrb[0].mxu0
  %1414 = vdwg.mxu0
  %v1415 = vmul.f32 %v1412, 0.999995
  %v1416 = vmax.f32 %v1415, 0.0
  %v1417 = vld [vmem:[%s61] sm:$0xff]
  %v1418 = vld [vmem:[#allocation3] sm:$0x1]
  %v1420 = vlaneseq
  %v1421 = vshrl.u32 %v1420, 7
  %v1422 = vsub.s32 0, %v1421
  %v1423 = vrot.slane %v1418, %v1422
  %v1426 = vsel %vm1159, %v1416, 0
  %1428 = vmatprep.subr.mxu0 0.0
  %1429 = vmatpush1.msra.mxu0 %v1417
  %1430 = vmatprep.subr.mxu0 0.0
  %1431 = vmatpush1.msra.mxu0 0.0
  %1432 = vmatprep.subr.mxu0 0.0
  %1433 = vmatpush1.msra.mxu0 0.0
  %1434 = vmatprep.subr.mxu0 0.0
  %1435 = vmatpush1.msra.mxu0 0.0
  %1436 = vmatprep.subr.mxu0 0.0
  %1437 = vmatpush1.msra.mxu0 0.0
  %1438 = vmatprep.subr.mxu0 0.0
  %1439 = vmatpush1.msra.mxu0 0.0
  %1440 = vmatprep.subr.mxu0 0.0
  %1441 = vmatpush1.msra.mxu0 0.0
  %1442 = vmatprep.subr.mxu0 0.0
  %1443 = vmatpush1.msra.mxu0 0.0
  %1444 = vmatprep.subr.mxu0 0.0
  %1445 = vmatpush1.msra.mxu0 0.0
  %1446 = vmatprep.subr.mxu0 0.0
  %1447 = vmatpush1.msra.mxu0 0.0
  %1448 = vmatprep.subr.mxu0 0.0
  %1449 = vmatpush1.msra.mxu0 0.0
  %1450 = vmatprep.subr.mxu0 0.0
  %1451 = vmatpush1.msra.mxu0 0.0
  %1452 = vmatprep.subr.mxu0 0.0
  %1453 = vmatpush1.msra.mxu0 0.0
  %1454 = vmatprep.subr.mxu0 0.0
  %1455 = vmatpush1.msra.mxu0 0.0
  %1456 = vmatprep.subr.mxu0 0.0
  %1457 = vmatpush1.msra.mxu0 0.0
  %1458 = vmatprep.subr.mxu0 0.0
  %1459 = vmatpush1.msra.mxu0 0.0
  %1460 = vmatprep.subr.mxu0 0.0
  %1461 = vmatpush1.msra.mxu0 0.0
  %1462 = vmatprep.subr.mxu0 0.0
  %1463 = vmatpush1.msra.mxu0 0.0
  %1464 = vmatprep.subr.mxu0 0.0
  %1465 = vmatpush1.msra.mxu0 0.0
  %1466 = vmatprep.subr.mxu0 0.0
  %1467 = vmatpush1.msra.mxu0 0.0
  %1468 = vmatprep.subr.mxu0 0.0
  %1469 = vmatpush1.msra.mxu0 0.0
  %1470 = vmatprep.subr.mxu0 0.0
  %1471 = vmatpush1.msra.mxu0 0.0
  %1472 = vmatprep.subr.mxu0 0.0
  %1473 = vmatpush1.msra.mxu0 0.0
  %1474 = vmatprep.subr.mxu0 0.0
  %1475 = vmatpush1.msra.mxu0 0.0
  %1476 = vmatprep.subr.mxu0 0.0
  %1477 = vmatpush1.msra.mxu0 0.0
  %1478 = vmatprep.subr.mxu0 0.0
  %1479 = vmatpush1.msra.mxu0 0.0
  %1480 = vmatprep.subr.mxu0 0.0
  %1481 = vmatpush1.msra.mxu0 0.0
  %1482 = vmatprep.subr.mxu0 0.0
  %1483 = vmatpush1.msra.mxu0 0.0
  %1484 = vmatprep.subr.mxu0 0.0
  %1485 = vmatpush1.msra.mxu0 0.0
  %1486 = vmatprep.subr.mxu0 0.0
  %1487 = vmatpush1.msra.mxu0 0.0
  %1488 = vmatprep.subr.mxu0 0.0
  %1489 = vmatpush1.msra.mxu0 0.0
  %1490 = vmatprep.subr.mxu0 0.0
  %1491 = vmatpush1.msra.mxu0 0.0
  %1492 = vmatprep.mubr.f32.mxu0 0.0
  %1493 = vmatmul.mubr.f32.gmra.mrb[0].mxu0 %v1426
  %v1494 = vpop.f32.mrb[0].mxu0
  %v1495 = vadd.f32 %v1423, %v1494
  %v1496 = vpop.f32.mrb[0].mxu0
  %1497 = vdwg.mxu0
  %v1498 = vxor.u32 %v1495, 2147483648
  %v1499 = vmul.f32 %v1498, 1.442695
  %v1500 = vpow.pop %v1499
  %v1501 = vadd.f32 %v1500, 1.0
  %v1502 = vrcp.pop %v1501
  %v1503 = vmul.f32 1.0, %v1502
  %vm1504 = vcmp.eq.s32.totalorder %v981, 1
  %1506 = vset.pattern.permute.xlu0 0
  %1507 = vperm.xlu0 %1506, %v1503
  %v1508 = vpop.permute.xlu0 %1507
  %v1510 = vsel %vm1504, %v1508, 0.0
  %v1511 = vadd.f32 %v1246, %v1510
  %1512 = vst [vmem:[%s65] sm:$0xff] %v1511
  // Predicated region
  $region130: #{ple_forward.1} parent=0 // pred_check
    _
  $region131: #{ple_forward.1} parent=0 // pred_check_branch
    %1514 = sbr.rel (0) target = $region133
  $region132: #{ple_forward.1} parent=0 // pred_region
    _
  $region133: #{ple_forward.1} parent=0 // pred_fallthru
    _
  // Predicated region
  $region134: #{ple_forward.1} parent=0 // pred_check
    _
  $region135: #{ple_forward.1} parent=0 // pred_check_branch
    %1516 = sbr.rel (0) target = $region137
  $region136: #{ple_forward.1} parent=0 // pred_region
    _
  $region137: #{ple_forward.1} parent=0 // pred_fallthru
    _

</llo_original>
